<compile_context>
chip_gen: v5e
topology: v5e:2x2
jax: 0.10.0
libtpu: 0.0.40
codegen_flags: <defaults>
</compile_context>

<pallas_src>
import functools

import numpy as np
import jax
import jax.numpy as jnp
from jax import lax
from jax.experimental import pallas as pl
from jax.experimental.pallas import tpu as pltpu


LANE = 128
# Per-step compute/IO VMEM budget used when growing the lane tile (leaves headroom under
# the 64 MiB physical VMEM of v7x and the 16/32 MiB scoped defaults of v5e/v6e).
_VMEM_COMPUTE_BUDGET = 32 * 1024 * 1024


def _dft_matrices(L):
    """Real-DFT matrices for bins 1..L/2 (DC handled analytically in-kernel)."""
    assert L % 2 == 0, "even seq_len required (matches torch.fft.irfft default n=2*(F-1))"
    F = L // 2 + 1
    P = F - 1
    n = np.arange(L)[None, :]
    k = np.arange(1, F)[:, None]                                   # skip DC
    ang = 2.0 * np.pi * k * n / L                                  # (P, L)
    fcos = np.cos(ang).astype(np.float32)                          # Xr[1:] = fcos @ x
    fsin = (-np.sin(ang)).astype(np.float32)                       # Xi[1:] = fsin @ x
    ck = np.full((P,), 2.0)
    ck[-1] = 1.0                                                   # Nyquist counted once
    ang_i = 2.0 * np.pi * np.arange(L)[:, None] * np.arange(1, F)[None, :] / L   # (L, P)
    icos = (np.cos(ang_i) * ck[None, :] / L).astype(np.float32)    # x_ac += icos @ Xr
    isin = (-np.sin(ang_i) * ck[None, :] / L).astype(np.float32)   # x_ac += isin @ Xi
    return fcos, fsin, icos, isin


def _gifn_kernel(x_ref, w_ref, fcos_ref, fsin_ref, icos_ref, isin_ref,
                 wf_ref, bf_ref, wa1a_ref, wa1b_ref, ba1_ref, wa2_ref, ba2_ref,
                 norm_ref, pred_ref, mag_ref, *, L, P):
    x = x_ref[...]                                                 # (L, CT) f32
    dft_dtype = fcos_ref.dtype
    mlp_dtype = wf_ref.dtype

    # DC bin of rfft: row 0 is all ones (imag identically 0) -> plain sublane sum (XLU).
    xr0 = jnp.sum(x, axis=0, keepdims=True)                        # (1, CT)

    # Forward DFT for bins 1..L/2 (split cos/sin matmuls -> no value slicing/concat).
    x_dft = x.astype(dft_dtype)
    xr1 = jnp.dot(fcos_ref[...], x_dft, preferred_element_type=jnp.float32)   # (P, CT)
    xi1 = jnp.dot(fsin_ref[...], x_dft, preferred_element_type=jnp.float32)   # (P, CT)
    mag = jnp.sqrt(xr1 * xr1 + xi1 * xi1)                          # (P, CT)
    total_energy = jnp.sum(mag, axis=0, keepdims=True)             # (1, CT)

    # Descending cumulative energy at each bin's own rank via a row-at-a-time pairwise
    # pass: cum_desc[p] = sum_q mag[q] * (mag[q] >= mag[p]).  One compare+select+add per
    # pair, no 3D intermediate, live ranges bounded by the fori_loop.
    # TODO(synk): tie-breaking differs from torch.sort for exactly-equal magnitudes.
    mag_ref[...] = mag

    def _pair_body(q, cum):
        row = mag_ref[pl.ds(q, 1), :]                              # (1, CT)
        return cum + jnp.where(row >= mag, row, 0.0)

    cum_desc = lax.fori_loop(0, P, _pair_body, jnp.zeros_like(mag))           # (P, CT)

    # Gini: mean of the ascending Lorenz curve.  Tie-free identity:
    #   sum_p c_asc[p] = (P+1)*total - sum_p cum_desc[p]  (no (P,CT) c_asc temp).
    total_clamped = jnp.maximum(total_energy, 1e-8)
    inv_t = pl.reciprocal(total_clamped, approx=True)              # EUP slot
    inv_t = inv_t * (2.0 - total_clamped * inv_t)                  # one Newton step
    c_asc_sum = (P + 1.0) * total_energy - jnp.sum(cum_desc, axis=0, keepdims=True)
    gini = 1.0 - 2.0 * (c_asc_sum * inv_t * (1.0 / P))             # (1, CT)

    w = jax.nn.sigmoid(w_ref[...])                                 # (1, CT)
    threshold = (1.0 - w + w * gini) * total_energy                # (1, CT)
    mask = jax.nn.sigmoid(threshold - cum_desc)                    # (P, CT)

    # Inverse DFT of the masked spectrum (split matmuls); DC contribution (mask==1) = xr0/L.
    xr_m = (xr1 * mask).astype(dft_dtype)
    xi_m = (xi1 * mask).astype(dft_dtype)
    x_filtered = (jnp.dot(icos_ref[...], xr_m, preferred_element_type=jnp.float32)
                  + jnp.dot(isin_ref[...], xi_m, preferred_element_type=jnp.float32)
                  + xr0 * (1.0 / L))                               # (L, CT)

    norm_ref[...] = (x - x_filtered).astype(norm_ref.dtype)

    # MLPfreq head in transposed form; fused layer split to avoid the (64+L, CT) concat.
    xf_lp = x_filtered.astype(mlp_dtype)
    x_lp = x.astype(mlp_dtype)
    h1 = jnp.maximum(jnp.dot(wf_ref[...], xf_lp, preferred_element_type=jnp.float32)
                     + bf_ref[...], 0.0)                           # (64, CT)
    h2 = jnp.maximum(jnp.dot(wa1a_ref[...], h1.astype(mlp_dtype),
                             preferred_element_type=jnp.float32)
                     + jnp.dot(wa1b_ref[...], x_lp, preferred_element_type=jnp.float32)
                     + ba1_ref[...], 0.0)                          # (128, CT)
    pred = (jnp.dot(wa2_ref[...], h2.astype(mlp_dtype), preferred_element_type=jnp.float32)
            + ba2_ref[...])                                        # (pred_len, CT)
    pred_ref[...] = pred.astype(pred_ref.dtype)


def _vmem_estimate(L, P, pred_len, ct, const_bytes):
    """Generous per-grid-step VMEM footprint estimate (bytes) for a lane tile of width ct."""
    f32 = 4
    io = 2 * ct * f32 * (L + 8 + L + max(pred_len, 8))     # double-buffered x, w, norm, pred
    live = ct * f32 * (3 * L + 7 * P + 256 + pred_len)     # in-kernel live values (rough)
    scratch = P * ct * f32                                  # mag scratch
    return io + live + scratch + const_bytes


def _choose_tiles(N, L, P, pred_len, const_bytes):
    """Pick lane-tile CT and padded lane extent.  Keeps >=2 grid steps whenever possible
    (so v7x's second TensorCore gets work) and respects the VMEM compute budget."""
    if N <= LANE:
        return N, N                                   # block == full lane extent (<128 OK)
    n_pad = -(-N // LANE) * LANE
    ct = LANE
    while (ct * 2 <= 512
           and n_pad % (ct * 2) == 0
           and n_pad // (ct * 2) >= 2
           and _vmem_estimate(L, P, pred_len, ct * 2, const_bytes) <= _VMEM_COMPUTE_BUDGET):
        ct *= 2
    return ct, n_pad


def gifn_normalize(x, weight, params, *, dft_dtype=jnp.float32, mlp_dtype=jnp.bfloat16):
    """GiFN.forward(x, mode='n'): returns (norm_input, pred_main_freq_signal).

    x: (B, L, D); weight: (1, D) (the module's nn.Parameter); params: MLPfreq weights in
    PyTorch (out, in) layout.  mlp_dtype routes the ReLU-MLP-head matmul operands through
    the bf16 MXU path (f32 accumulation); dft_dtype stays f32 by default so the
    forward+inverse DFT round-trip matches the FFT reference.
    """
    B, L, D = x.shape
    P = L // 2
    Wf, bf, Wa1, ba1, Wa2, ba2 = (params[k] for k in ("Wf", "bf", "Wa1", "ba1", "Wa2", "ba2"))
    H1 = Wf.shape[0]                  # 64
    pred_len = Wa2.shape[0]

    fcos, fsin, icos, isin = _dft_matrices(L)

    consts = [
        jnp.asarray(fcos, dft_dtype),                   # (P, L)
        jnp.asarray(fsin, dft_dtype),                   # (P, L)
        jnp.asarray(icos, dft_dtype),                   # (L, P)
        jnp.asarray(isin, dft_dtype),                   # (L, P)
        Wf.astype(mlp_dtype),                           # (64, L)
        bf.reshape(H1, 1).astype(jnp.float32),          # (64, 1)
        Wa1[:, :H1].astype(mlp_dtype),                  # (128, 64)
        Wa1[:, H1:].astype(mlp_dtype),                  # (128, L)
        ba1.reshape(-1, 1).astype(jnp.float32),         # (128, 1)
        Wa2.astype(mlp_dtype),                          # (pred_len, 128)
        ba2.reshape(pred_len, 1).astype(jnp.float32),   # (pred_len, 1)
    ]
    const_bytes = sum(int(np.prod(a.shape)) * a.dtype.itemsize for a in consts)

    N = B * D
    CT, N_pad = _choose_tiles(N, L, P, pred_len, const_bytes)
    est = _vmem_estimate(L, P, pred_len, CT, const_bytes)
    vmem_limit = int(min(max(2 * est, 32 << 20), 48 << 20))   # explicit, v7x-safe (<64 MiB)

    # Fold batch into the lane axis: (B, L, D) -> (L, B*D); pad lanes to a CT multiple.
    x_slab = jnp.transpose(x.astype(jnp.float32), (1, 0, 2)).reshape(L, N)
    w_slab = jnp.tile(weight.astype(jnp.float32).reshape(1, D), (1, B))
    if N_pad != N:
        pad = ((0, 0), (0, N_pad - N))
        x_slab = jnp.pad(x_slab, pad)
        w_slab = jnp.pad(w_slab, pad)

    kernel = functools.partial(_gifn_kernel, L=L, P=P)

    def build_call(single_buffer_consts):
        def const_spec(a):
            # Constant block index -> resident across the grid; single-buffer it so it does
            # not pay the default 2x VMEM residency of the pipeline.
            if single_buffer_consts:
                return pl.BlockSpec(a.shape, lambda c: (0,) * a.ndim,
                                    pipeline_mode=pl.Buffered(1))
            return pl.BlockSpec(a.shape, lambda c: (0,) * a.ndim)

        in_specs = ([pl.BlockSpec((L, CT), lambda c: (0, c)),
                     pl.BlockSpec((1, CT), lambda c: (0, c))]
                    + [const_spec(a) for a in consts])
        out_specs = (pl.BlockSpec((L, CT), lambda c: (0, c)),
                     pl.BlockSpec((pred_len, CT), lambda c: (0, c)))
        out_shape = (jax.ShapeDtypeStruct((L, N_pad), jnp.float32),
                     jax.ShapeDtypeStruct((pred_len, N_pad), jnp.float32))
        return pl.pallas_call(
            kernel,
            out_shape=out_shape,
            grid_spec=pltpu.PrefetchScalarGridSpec(
                num_scalar_prefetch=0,
                grid=(N_pad // CT,),
                in_specs=in_specs,
                out_specs=out_specs,
                scratch_shapes=[pltpu.VMEM((P, CT), jnp.float32)],   # mag (dyn row reads)
            ),
            compiler_params=pltpu.CompilerParams(
                dimension_semantics=("parallel",),   # no cross-step carry -> megacore OK
                vmem_limit_bytes=vmem_limit,
            ),
        )

    try:
        norm_slab, pred_slab = build_call(True)(x_slab, w_slab, *consts)
    except Exception:
        # Fallback in case single-buffered (Buffered(1)) const specs are rejected.
        norm_slab, pred_slab = build_call(False)(x_slab, w_slab, *consts)

    norm = jnp.transpose(norm_slab[:, :N].reshape(L, B, D), (1, 0, 2))          # (B, L, D)
    pred = jnp.transpose(pred_slab[:, :N].reshape(pred_len, B, D), (1, 0, 2))   # (B, pred, D)
    return norm, pred


# ----------------------- pure-JAX reference (for validation) -----------------------
def gifn_reference(x, weight, params):
    B, L, D = x.shape
    xf = jnp.fft.rfft(x, axis=1)
    mag = jnp.abs(xf[:, 1:])
    total_energy = mag.sum(axis=1, keepdims=True)
    mag4g = jnp.transpose(mag, (0, 2, 1))
    cum = jnp.cumsum(jnp.sort(mag4g, axis=2), axis=2)
    tot = jnp.maximum(cum[:, :, -1:], 1e-8)
    gini = 1.0 - 2.0 * (cum / tot).mean(axis=2)
    w = jax.nn.sigmoid(weight)
    eth = 1.0 - w + w * gini
    order = jnp.argsort(-mag, axis=1)
    cume = jnp.cumsum(jnp.take_along_axis(mag, order, axis=1), axis=1)
    thr = eth[:, None, :] * total_energy
    smask = jax.nn.sigmoid(thr - cume)
    inv = jnp.argsort(order, axis=1)
    mask = jnp.take_along_axis(smask, inv, axis=1)
    mask_full = jnp.concatenate([jnp.ones((B, 1, D), jnp.float32), mask], axis=1)
    x_filtered = jnp.fft.irfft(xf * mask_full, n=L, axis=1).astype(jnp.float32)
    norm_input = x - x_filtered

    Wf, bf, Wa1, ba1, Wa2, ba2 = (params[k] for k in ("Wf", "bf", "Wa1", "ba1", "Wa2", "ba2"))
    xft = jnp.transpose(x_filtered, (0, 2, 1))
    xt = jnp.transpose(x, (0, 2, 1))
    h1 = jax.nn.relu(xft @ Wf.T + bf)
    h2 = jax.nn.relu(jnp.concatenate([h1, xt], axis=-1) @ Wa1.T + ba1)
    pred = h2 @ Wa2.T + ba2                      # (B, D, pred_len)
    return norm_input, jnp.transpose(pred, (0, 2, 1))


def init_params(key, seq_len, pred_len):
    ks = jax.random.split(key, 3)

    def lin(k, out_f, in_f):
        bound = 1.0 / np.sqrt(in_f)
        kw, kb = jax.random.split(k)
        W = jax.random.uniform(kw, (out_f, in_f), jnp.float32, -bound, bound)
        b = jax.random.uniform(kb, (out_f,), jnp.float32, -bound, bound)
        return W, b

    Wf, bf = lin(ks[0], 64, seq_len)
    Wa1, ba1 = lin(ks[1], 128, 64 + seq_len)
    Wa2, ba2 = lin(ks[2], pred_len, 128)
    return dict(Wf=Wf, bf=bf, Wa1=Wa1, ba1=ba1, Wa2=Wa2, ba2=ba2)


if __name__ == "__main__":
    key = jax.random.PRNGKey(0)

    def run_case(B, L, D, pred_len, kcase, mlp_dtype, pred_tol):
        kx, kw, kp = jax.random.split(kcase, 3)
        x = jax.random.normal(kx, (B, L, D), jnp.float32)
        weight = 0.3 * jax.random.normal(kw, (1, D), jnp.float32)
        params = init_params(kp, L, pred_len)
        norm_out, pred_out = gifn_normalize(x, weight, params, mlp_dtype=mlp_dtype)
        jax.block_until_ready((norm_out, pred_out))
        norm_exp, pred_exp = gifn_reference(x, weight, params)
        assert np.allclose(np.asarray(norm_out), np.asarray(norm_exp),
                           atol=5e-3, rtol=5e-3), "norm mismatch"
        assert np.allclose(np.asarray(pred_out), np.asarray(pred_exp),
                           atol=pred_tol, rtol=pred_tol), "pred mismatch"

    k1, k2 = jax.random.split(key)
    # tiny case: B*D = 8 -> single full-extent lane tile; exact f32 MLP head (tight check)
    run_case(2, 16, 4, 8, k1, jnp.float32, 5e-3)
    # folded case: B*D = 160 -> padded 256 lanes, 2 grid steps; default bf16 MLP head
    run_case(4, 16, 40, 8, k2, jnp.bfloat16, 8e-2)
    print("KERNEL_OK")
</pallas_src>

<mosaic_0001>
module attributes {stable_mosaic.version = 11 : i64} {
  func.func @_gifn_kernel(%arg0: i32, %arg1: memref<16x8xf32, #tpu.memory_space<vmem>>, %arg2: memref<1x8xf32, #tpu.memory_space<vmem>>, %arg3: memref<8x16xf32, #tpu.memory_space<vmem>>, %arg4: memref<8x16xf32, #tpu.memory_space<vmem>>, %arg5: memref<16x8xf32, #tpu.memory_space<vmem>>, %arg6: memref<16x8xf32, #tpu.memory_space<vmem>>, %arg7: memref<64x16xf32, #tpu.memory_space<vmem>>, %arg8: memref<64x1xf32, #tpu.memory_space<vmem>>, %arg9: memref<128x64xf32, #tpu.memory_space<vmem>>, %arg10: memref<128x16xf32, #tpu.memory_space<vmem>>, %arg11: memref<128x1xf32, #tpu.memory_space<vmem>>, %arg12: memref<8x128xf32, #tpu.memory_space<vmem>>, %arg13: memref<8x1xf32, #tpu.memory_space<vmem>>, %arg14: memref<16x8xf32, #tpu.memory_space<vmem>>, %arg15: memref<8x8xf32, #tpu.memory_space<vmem>>, %arg16: memref<8x8xf32, #tpu.memory_space<vmem>>) attributes {dimension_semantics = [#tpu.dimension_semantics<parallel>], iteration_bounds = array<i64: 1>, scalar_prefetch = 0 : i64, scratch_operands = 1 : i64, tpu.core_type = #tpu.core_type<tc>, window_params = [{transform_indices = @transform_0, window_bounds = array<i64: 16, 8>}, {transform_indices = @transform_1, window_bounds = array<i64: 1, 8>}, {pipeline_mode = #tpu.pipeline_mode<synchronous>, transform_indices = @transform_2, window_bounds = array<i64: 8, 16>}, {pipeline_mode = #tpu.pipeline_mode<synchronous>, transform_indices = @transform_3, window_bounds = array<i64: 8, 16>}, {pipeline_mode = #tpu.pipeline_mode<synchronous>, transform_indices = @transform_4, window_bounds = array<i64: 16, 8>}, {pipeline_mode = #tpu.pipeline_mode<synchronous>, transform_indices = @transform_5, window_bounds = array<i64: 16, 8>}, {pipeline_mode = #tpu.pipeline_mode<synchronous>, transform_indices = @transform_6, window_bounds = array<i64: 64, 16>}, {pipeline_mode = #tpu.pipeline_mode<synchronous>, transform_indices = @transform_7, window_bounds = array<i64: 64, 1>}, {pipeline_mode = #tpu.pipeline_mode<synchronous>, transform_indices = @transform_8, window_bounds = array<i64: 128, 64>}, {pipeline_mode = #tpu.pipeline_mode<synchronous>, transform_indices = @transform_9, window_bounds = array<i64: 128, 16>}, {pipeline_mode = #tpu.pipeline_mode<synchronous>, transform_indices = @transform_10, window_bounds = array<i64: 128, 1>}, {pipeline_mode = #tpu.pipeline_mode<synchronous>, transform_indices = @transform_11, window_bounds = array<i64: 8, 128>}, {pipeline_mode = #tpu.pipeline_mode<synchronous>, transform_indices = @transform_12, window_bounds = array<i64: 8, 1>}, {transform_indices = @transform_13, window_bounds = array<i64: 16, 8>}, {transform_indices = @transform_14, window_bounds = array<i64: 8, 8>}]} {
    %c0 = arith.constant 0 : index
    %c0_0 = arith.constant 0 : index
    %0 = vector.load %arg1[%c0, %c0_0] : memref<16x8xf32, #tpu.memory_space<vmem>>, vector<16x8xf32>
    %cst = arith.constant dense<0.000000e+00> : vector<8xf32>
    %1 = vector.multi_reduction <add>, %0, %cst [0] : vector<16x8xf32> to vector<8xf32>
    %2 = vector.shape_cast %1 : vector<8xf32> to vector<1x8xf32>
    %c0_1 = arith.constant 0 : index
    %c0_2 = arith.constant 0 : index
    %3 = vector.load %arg3[%c0_1, %c0_2] : memref<8x16xf32, #tpu.memory_space<vmem>>, vector<8x16xf32>
    %cst_3 = arith.constant dense<0.000000e+00> : vector<8x8xf32>
    %4 = tpu.matmul %3, %0, %cst_3 {dimension_numbers = #tpu.dot_dimension_numbers<[1], [0], [0], [1], [0, 0, 1, 1], [], []>} : vector<8x16xf32>, vector<16x8xf32>, vector<8x8xf32> -> vector<8x8xf32>
    %c0_4 = arith.constant 0 : index
    %c0_5 = arith.constant 0 : index
    %5 = vector.load %arg4[%c0_4, %c0_5] : memref<8x16xf32, #tpu.memory_space<vmem>>, vector<8x16xf32>
    %cst_6 = arith.constant dense<0.000000e+00> : vector<8x8xf32>
    %6 = tpu.matmul %5, %0, %cst_6 {dimension_numbers = #tpu.dot_dimension_numbers<[1], [0], [0], [1], [0, 0, 1, 1], [], []>} : vector<8x16xf32>, vector<16x8xf32>, vector<8x8xf32> -> vector<8x8xf32>
    %7 = arith.mulf %4, %4 : vector<8x8xf32>
    %8 = arith.mulf %6, %6 : vector<8x8xf32>
    %9 = arith.addf %7, %8 : vector<8x8xf32>
    %10 = math.sqrt %9 : vector<8x8xf32>
    %cst_7 = arith.constant dense<0.000000e+00> : vector<8xf32>
    %11 = vector.multi_reduction <add>, %10, %cst_7 [0] : vector<8x8xf32> to vector<8xf32>
    %12 = vector.shape_cast %11 : vector<8xf32> to vector<1x8xf32>
    %c0_8 = arith.constant 0 : index
    %c0_9 = arith.constant 0 : index
    %13 = vector.load %arg16[%c0_8, %c0_9] : memref<8x8xf32, #tpu.memory_space<vmem>>, vector<8x8xf32>
    tpu.vector_store %arg16[%c0_8, %c0_9], %10 {strides = array<i32>} : memref<8x8xf32, #tpu.memory_space<vmem>>, vector<8x8xf32>,
    %cst_10 = arith.constant 0.000000e+00 : f32
    %14 = vector.broadcast %cst_10 : f32 to vector<8x8xf32>
    %c0_i32 = arith.constant 0 : i32
    %c8_i32 = arith.constant 8 : i32
    %15 = arith.addi %c0_i32, %c8_i32 : i32
    %c1_i32 = arith.constant 1 : i32
    %16 = scf.for %arg17 = %c0_i32 to %15 step %c1_i32 iter_args(%arg18 = %14) -> (vector<8x8xf32>)  : i32 {
      %90 = arith.index_cast %arg17 : i32 to index
      %c0_55 = arith.constant 0 : index
      %91 = vector.load %arg16[%90, %c0_55] : memref<8x8xf32, #tpu.memory_space<vmem>>, vector<1x8xf32>
      %92 = vector.broadcast %91 : vector<1x8xf32> to vector<8x8xf32>
      %93 = arith.cmpf oge, %92, %10 : vector<8x8xf32>
      %cst_56 = arith.constant 0.000000e+00 : f32
      %94 = vector.shape_cast %91 : vector<1x8xf32> to vector<1x8xf32>
      %95 = vector.broadcast %94 : vector<1x8xf32> to vector<8x8xf32>
      %96 = vector.broadcast %cst_56 : f32 to vector<8x8xf32>
      %97 = arith.select %93, %95, %96 : vector<8x8xi1>, vector<8x8xf32>
      %98 = arith.addf %arg18, %97 : vector<8x8xf32>
      scf.yield %98 : vector<8x8xf32>
    }
    %c8_i32_11 = arith.constant 8 : i32
    %cst_12 = arith.constant 9.99999993E-9 : f32
    %17 = vector.broadcast %cst_12 : f32 to vector<1x8xf32>
    %18 = arith.maximumf %12, %17 : vector<1x8xf32>
    %19 = tpu.reciprocal %18 {approx = true} : vector<1x8xf32> -> vector<1x8xf32>
    %20 = arith.mulf %18, %19 : vector<1x8xf32>
    %cst_13 = arith.constant 2.000000e+00 : f32
    %21 = vector.broadcast %cst_13 : f32 to vector<1x8xf32>
    %22 = arith.subf %21, %20 : vector<1x8xf32>
    %23 = arith.mulf %19, %22 : vector<1x8xf32>
    %cst_14 = arith.constant 9.000000e+00 : f32
    %24 = vector.broadcast %cst_14 : f32 to vector<1x8xf32>
    %25 = arith.mulf %24, %12 : vector<1x8xf32>
    %cst_15 = arith.constant dense<0.000000e+00> : vector<8xf32>
    %26 = vector.multi_reduction <add>, %16, %cst_15 [0] : vector<8x8xf32> to vector<8xf32>
    %27 = vector.shape_cast %26 : vector<8xf32> to vector<1x8xf32>
    %28 = arith.subf %25, %27 : vector<1x8xf32>
    %29 = arith.mulf %28, %23 : vector<1x8xf32>
    %cst_16 = arith.constant 1.250000e-01 : f32
    %30 = vector.broadcast %cst_16 : f32 to vector<1x8xf32>
    %31 = arith.mulf %29, %30 : vector<1x8xf32>
    %cst_17 = arith.constant 2.000000e+00 : f32
    %32 = vector.broadcast %cst_17 : f32 to vector<1x8xf32>
    %33 = arith.mulf %32, %31 : vector<1x8xf32>
    %cst_18 = arith.constant 1.000000e+00 : f32
    %34 = vector.broadcast %cst_18 : f32 to vector<1x8xf32>
    %35 = arith.subf %34, %33 : vector<1x8xf32>
    %c0_19 = arith.constant 0 : index
    %c0_20 = arith.constant 0 : index
    %36 = vector.load %arg2[%c0_19, %c0_20] : memref<1x8xf32, #tpu.memory_space<vmem>>, vector<1x8xf32>
    %37 = arith.negf %36 : vector<1x8xf32>
    %38 = math.exp %37 : vector<1x8xf32>
    %cst_21 = arith.constant 1.000000e+00 : f32
    %39 = vector.broadcast %cst_21 : f32 to vector<1x8xf32>
    %40 = arith.addf %39, %38 : vector<1x8xf32>
    %41 = arith.divf %39, %40 : vector<1x8xf32>
    %cst_22 = arith.constant 1.000000e+00 : f32
    %42 = vector.broadcast %cst_22 : f32 to vector<1x8xf32>
    %43 = arith.subf %42, %41 : vector<1x8xf32>
    %44 = arith.mulf %41, %35 : vector<1x8xf32>
    %45 = arith.addf %43, %44 : vector<1x8xf32>
    %46 = arith.mulf %45, %12 : vector<1x8xf32>
    %47 = vector.broadcast %46 : vector<1x8xf32> to vector<8x8xf32>
    %48 = arith.subf %47, %16 : vector<8x8xf32>
    %49 = arith.negf %48 : vector<8x8xf32>
    %50 = math.exp %49 : vector<8x8xf32>
    %cst_23 = arith.constant 1.000000e+00 : f32
    %51 = vector.broadcast %cst_23 : f32 to vector<8x8xf32>
    %52 = arith.addf %51, %50 : vector<8x8xf32>
    %53 = arith.divf %51, %52 : vector<8x8xf32>
    %54 = arith.mulf %4, %53 : vector<8x8xf32>
    %55 = arith.mulf %6, %53 : vector<8x8xf32>
    %c0_24 = arith.constant 0 : index
    %c0_25 = arith.constant 0 : index
    %56 = vector.load %arg5[%c0_24, %c0_25] : memref<16x8xf32, #tpu.memory_space<vmem>>, vector<16x8xf32>
    %cst_26 = arith.constant dense<0.000000e+00> : vector<16x8xf32>
    %57 = tpu.matmul %56, %54, %cst_26 {dimension_numbers = #tpu.dot_dimension_numbers<[1], [0], [0], [1], [0, 0, 1, 1], [], []>} : vector<16x8xf32>, vector<8x8xf32>, vector<16x8xf32> -> vector<16x8xf32>
    %c0_27 = arith.constant 0 : index
    %c0_28 = arith.constant 0 : index
    %58 = vector.load %arg6[%c0_27, %c0_28] : memref<16x8xf32, #tpu.memory_space<vmem>>, vector<16x8xf32>
    %cst_29 = arith.constant dense<0.000000e+00> : vector<16x8xf32>
    %59 = tpu.matmul %58, %55, %cst_29 {dimension_numbers = #tpu.dot_dimension_numbers<[1], [0], [0], [1], [0, 0, 1, 1], [], []>} : vector<16x8xf32>, vector<8x8xf32>, vector<16x8xf32> -> vector<16x8xf32>
    %60 = arith.addf %57, %59 : vector<16x8xf32>
    %cst_30 = arith.constant 6.250000e-02 : f32
    %61 = vector.broadcast %cst_30 : f32 to vector<1x8xf32>
    %62 = arith.mulf %2, %61 : vector<1x8xf32>
    %63 = vector.broadcast %62 : vector<1x8xf32> to vector<16x8xf32>
    %64 = arith.addf %60, %63 : vector<16x8xf32>
    %65 = arith.subf %0, %64 : vector<16x8xf32>
    %c0_31 = arith.constant 0 : index
    %c0_32 = arith.constant 0 : index
    %66 = vector.load %arg14[%c0_31, %c0_32] : memref<16x8xf32, #tpu.memory_space<vmem>>, vector<16x8xf32>
    tpu.vector_store %arg14[%c0_31, %c0_32], %65 {strides = array<i32>} : memref<16x8xf32, #tpu.memory_space<vmem>>, vector<16x8xf32>,
    %c0_33 = arith.constant 0 : index
    %c0_34 = arith.constant 0 : index
    %67 = vector.load %arg7[%c0_33, %c0_34] : memref<64x16xf32, #tpu.memory_space<vmem>>, vector<64x16xf32>
    %cst_35 = arith.constant dense<0.000000e+00> : vector<64x8xf32>
    %68 = tpu.matmul %67, %64, %cst_35 {dimension_numbers = #tpu.dot_dimension_numbers<[1], [0], [0], [1], [0, 0, 1, 1], [], []>} : vector<64x16xf32>, vector<16x8xf32>, vector<64x8xf32> -> vector<64x8xf32>
    %c0_36 = arith.constant 0 : index
    %c0_37 = arith.constant 0 : index
    %69 = vector.load %arg8[%c0_36, %c0_37] : memref<64x1xf32, #tpu.memory_space<vmem>>, vector<64x1xf32>
    %70 = vector.broadcast %69 : vector<64x1xf32> to vector<64x8xf32>
    %71 = arith.addf %68, %70 : vector<64x8xf32>
    %cst_38 = arith.constant 0.000000e+00 : f32
    %72 = vector.broadcast %cst_38 : f32 to vector<64x8xf32>
    %73 = arith.maximumf %71, %72 : vector<64x8xf32>
    %c0_39 = arith.constant 0 : index
    %c0_40 = arith.constant 0 : index
    %74 = vector.load %arg9[%c0_39, %c0_40] : memref<128x64xf32, #tpu.memory_space<vmem>>, vector<128x64xf32>
    %cst_41 = arith.constant dense<0.000000e+00> : vector<128x8xf32>
    %75 = tpu.matmul %74, %73, %cst_41 {dimension_numbers = #tpu.dot_dimension_numbers<[1], [0], [0], [1], [0, 0, 1, 1], [], []>} : vector<128x64xf32>, vector<64x8xf32>, vector<128x8xf32> -> vector<128x8xf32>
    %c0_42 = arith.constant 0 : index
    %c0_43 = arith.constant 0 : index
    %76 = vector.load %arg10[%c0_42, %c0_43] : memref<128x16xf32, #tpu.memory_space<vmem>>, vector<128x16xf32>
    %cst_44 = arith.constant dense<0.000000e+00> : vector<128x8xf32>
    %77 = tpu.matmul %76, %0, %cst_44 {dimension_numbers = #tpu.dot_dimension_numbers<[1], [0], [0], [1], [0, 0, 1, 1], [], []>} : vector<128x16xf32>, vector<16x8xf32>, vector<128x8xf32> -> vector<128x8xf32>
    %78 = arith.addf %75, %77 : vector<128x8xf32>
    %c0_45 = arith.constant 0 : index
    %c0_46 = arith.constant 0 : index
    %79 = vector.load %arg11[%c0_45, %c0_46] : memref<128x1xf32, #tpu.memory_space<vmem>>, vector<128x1xf32>
    %80 = vector.broadcast %79 : vector<128x1xf32> to vector<128x8xf32>
    %81 = arith.addf %78, %80 : vector<128x8xf32>
    %cst_47 = arith.constant 0.000000e+00 : f32
    %82 = vector.broadcast %cst_47 : f32 to vector<128x8xf32>
    %83 = arith.maximumf %81, %82 : vector<128x8xf32>
    %c0_48 = arith.constant 0 : index
    %c0_49 = arith.constant 0 : index
    %84 = vector.load %arg12[%c0_48, %c0_49] : memref<8x128xf32, #tpu.memory_space<vmem>>, vector<8x128xf32>
    %cst_50 = arith.constant dense<0.000000e+00> : vector<8x8xf32>
    %85 = tpu.matmul %84, %83, %cst_50 {dimension_numbers = #tpu.dot_dimension_numbers<[1], [0], [0], [1], [0, 0, 1, 1], [], []>} : vector<8x128xf32>, vector<128x8xf32>, vector<8x8xf32> -> vector<8x8xf32>
    %c0_51 = arith.constant 0 : index
    %c0_52 = arith.constant 0 : index
    %86 = vector.load %arg13[%c0_51, %c0_52] : memref<8x1xf32, #tpu.memory_space<vmem>>, vector<8x1xf32>
    %87 = vector.broadcast %86 : vector<8x1xf32> to vector<8x8xf32>
    %88 = arith.addf %85, %87 : vector<8x8xf32>
    %c0_53 = arith.constant 0 : index
    %c0_54 = arith.constant 0 : index
    %89 = vector.load %arg15[%c0_53, %c0_54] : memref<8x8xf32, #tpu.memory_space<vmem>>, vector<8x8xf32>
    tpu.vector_store %arg15[%c0_53, %c0_54], %88 {strides = array<i32>} : memref<8x8xf32, #tpu.memory_space<vmem>>, vector<8x8xf32>,
    return
  }
  func.func @transform_0(%arg0: i32) -> (i32, i32) {
    %c0_i32 = arith.constant 0 : i32
    %c0_i32_0 = arith.constant 0 : i32
    return %c0_i32, %arg0 : i32, i32
  }
  func.func @transform_1(%arg0: i32) -> (i32, i32) {
    %c0_i32 = arith.constant 0 : i32
    %c0_i32_0 = arith.constant 0 : i32
    return %c0_i32, %arg0 : i32, i32
  }
  func.func @transform_2(%arg0: i32) -> (i32, i32) {
    %c0_i32 = arith.constant 0 : i32
    %c0_i32_0 = arith.constant 0 : i32
    %c0_i32_1 = arith.constant 0 : i32
    return %c0_i32, %c0_i32_0 : i32, i32
  }
  func.func @transform_3(%arg0: i32) -> (i32, i32) {
    %c0_i32 = arith.constant 0 : i32
    %c0_i32_0 = arith.constant 0 : i32
    %c0_i32_1 = arith.constant 0 : i32
    return %c0_i32, %c0_i32_0 : i32, i32
  }
  func.func @transform_4(%arg0: i32) -> (i32, i32) {
    %c0_i32 = arith.constant 0 : i32
    %c0_i32_0 = arith.constant 0 : i32
    %c0_i32_1 = arith.constant 0 : i32
    return %c0_i32, %c0_i32_0 : i32, i32
  }
  func.func @transform_5(%arg0: i32) -> (i32, i32) {
    %c0_i32 = arith.constant 0 : i32
    %c0_i32_0 = arith.constant 0 : i32
    %c0_i32_1 = arith.constant 0 : i32
    return %c0_i32, %c0_i32_0 : i32, i32
  }
  func.func @transform_6(%arg0: i32) -> (i32, i32) {
    %c0_i32 = arith.constant 0 : i32
    %c0_i32_0 = arith.constant 0 : i32
    %c0_i32_1 = arith.constant 0 : i32
    return %c0_i32, %c0_i32_0 : i32, i32
  }
  func.func @transform_7(%arg0: i32) -> (i32, i32) {
    %c0_i32 = arith.constant 0 : i32
    %c0_i32_0 = arith.constant 0 : i32
    %c0_i32_1 = arith.constant 0 : i32
    return %c0_i32, %c0_i32_0 : i32, i32
  }
  func.func @transform_8(%arg0: i32) -> (i32, i32) {
    %c0_i32 = arith.constant 0 : i32
    %c0_i32_0 = arith.constant 0 : i32
    %c0_i32_1 = arith.constant 0 : i32
    return %c0_i32, %c0_i32_0 : i32, i32
  }
  func.func @transform_9(%arg0: i32) -> (i32, i32) {
    %c0_i32 = arith.constant 0 : i32
    %c0_i32_0 = arith.constant 0 : i32
    %c0_i32_1 = arith.constant 0 : i32
    return %c0_i32, %c0_i32_0 : i32, i32
  }
  func.func @transform_10(%arg0: i32) -> (i32, i32) {
    %c0_i32 = arith.constant 0 : i32
    %c0_i32_0 = arith.constant 0 : i32
    %c0_i32_1 = arith.constant 0 : i32
    return %c0_i32, %c0_i32_0 : i32, i32
  }
  func.func @transform_11(%arg0: i32) -> (i32, i32) {
    %c0_i32 = arith.constant 0 : i32
    %c0_i32_0 = arith.constant 0 : i32
    %c0_i32_1 = arith.constant 0 : i32
    return %c0_i32, %c0_i32_0 : i32, i32
  }
  func.func @transform_12(%arg0: i32) -> (i32, i32) {
    %c0_i32 = arith.constant 0 : i32
    %c0_i32_0 = arith.constant 0 : i32
    %c0_i32_1 = arith.constant 0 : i32
    return %c0_i32, %c0_i32_0 : i32, i32
  }
  func.func @transform_13(%arg0: i32) -> (i32, i32) {
    %c0_i32 = arith.constant 0 : i32
    %c0_i32_0 = arith.constant 0 : i32
    return %c0_i32, %arg0 : i32, i32
  }
  func.func @transform_14(%arg0: i32) -> (i32, i32) {
    %c0_i32 = arith.constant 0 : i32
    %c0_i32_0 = arith.constant 0 : i32
    return %c0_i32, %arg0 : i32, i32
  }
}

module attributes {stable_mosaic.version = 11 : i64} {
  func.func @_gifn_kernel(%arg0: i32, %arg1: memref<16x8xf32, #tpu.memory_space<vmem>>, %arg2: memref<1x8xf32, #tpu.memory_space<vmem>>, %arg3: memref<8x16xf32, #tpu.memory_space<vmem>>, %arg4: memref<8x16xf32, #tpu.memory_space<vmem>>, %arg5: memref<16x8xf32, #tpu.memory_space<vmem>>, %arg6: memref<16x8xf32, #tpu.memory_space<vmem>>, %arg7: memref<64x16xf32, #tpu.memory_space<vmem>>, %arg8: memref<64x1xf32, #tpu.memory_space<vmem>>, %arg9: memref<128x64xf32, #tpu.memory_space<vmem>>, %arg10: memref<128x16xf32, #tpu.memory_space<vmem>>, %arg11: memref<128x1xf32, #tpu.memory_space<vmem>>, %arg12: memref<8x128xf32, #tpu.memory_space<vmem>>, %arg13: memref<8x1xf32, #tpu.memory_space<vmem>>, %arg14: memref<16x8xf32, #tpu.memory_space<vmem>>, %arg15: memref<8x8xf32, #tpu.memory_space<vmem>>, %arg16: memref<8x8xf32, #tpu.memory_space<vmem>>) attributes {dimension_semantics = [#tpu.dimension_semantics<parallel>], iteration_bounds = array<i64: 1>, scalar_prefetch = 0 : i64, scratch_operands = 1 : i64, tpu.core_type = #tpu.core_type<tc>, window_params = [{transform_indices = @transform_0, window_bounds = array<i64: 16, 8>}, {transform_indices = @transform_1, window_bounds = array<i64: 1, 8>}, {pipeline_mode = #tpu.pipeline_mode<synchronous>, transform_indices = @transform_2, window_bounds = array<i64: 8, 16>}, {pipeline_mode = #tpu.pipeline_mode<synchronous>, transform_indices = @transform_3, window_bounds = array<i64: 8, 16>}, {pipeline_mode = #tpu.pipeline_mode<synchronous>, transform_indices = @transform_4, window_bounds = array<i64: 16, 8>}, {pipeline_mode = #tpu.pipeline_mode<synchronous>, transform_indices = @transform_5, window_bounds = array<i64: 16, 8>}, {pipeline_mode = #tpu.pipeline_mode<synchronous>, transform_indices = @transform_6, window_bounds = array<i64: 64, 16>}, {pipeline_mode = #tpu.pipeline_mode<synchronous>, transform_indices = @transform_7, window_bounds = array<i64: 64, 1>}, {pipeline_mode = #tpu.pipeline_mode<synchronous>, transform_indices = @transform_8, window_bounds = array<i64: 128, 64>}, {pipeline_mode = #tpu.pipeline_mode<synchronous>, transform_indices = @transform_9, window_bounds = array<i64: 128, 16>}, {pipeline_mode = #tpu.pipeline_mode<synchronous>, transform_indices = @transform_10, window_bounds = array<i64: 128, 1>}, {pipeline_mode = #tpu.pipeline_mode<synchronous>, transform_indices = @transform_11, window_bounds = array<i64: 8, 128>}, {pipeline_mode = #tpu.pipeline_mode<synchronous>, transform_indices = @transform_12, window_bounds = array<i64: 8, 1>}, {transform_indices = @transform_13, window_bounds = array<i64: 16, 8>}, {transform_indices = @transform_14, window_bounds = array<i64: 8, 8>}]} {
    %c0 = arith.constant 0 : index
    %c0_0 = arith.constant 0 : index
    %0 = vector.load %arg1[%c0, %c0_0] : memref<16x8xf32, #tpu.memory_space<vmem>>, vector<16x8xf32>
    %cst = arith.constant dense<0.000000e+00> : vector<8xf32>
    %1 = vector.multi_reduction <add>, %0, %cst [0] : vector<16x8xf32> to vector<8xf32>
    %2 = vector.shape_cast %1 : vector<8xf32> to vector<1x8xf32>
    %c0_1 = arith.constant 0 : index
    %c0_2 = arith.constant 0 : index
    %3 = vector.load %arg3[%c0_1, %c0_2] : memref<8x16xf32, #tpu.memory_space<vmem>>, vector<8x16xf32>
    %cst_3 = arith.constant dense<0.000000e+00> : vector<8x8xf32>
    %4 = tpu.matmul %3, %0, %cst_3 {dimension_numbers = #tpu.dot_dimension_numbers<[1], [0], [0], [1], [0, 0, 1, 1], [], []>} : vector<8x16xf32>, vector<16x8xf32>, vector<8x8xf32> -> vector<8x8xf32>
    %c0_4 = arith.constant 0 : index
    %c0_5 = arith.constant 0 : index
    %5 = vector.load %arg4[%c0_4, %c0_5] : memref<8x16xf32, #tpu.memory_space<vmem>>, vector<8x16xf32>
    %cst_6 = arith.constant dense<0.000000e+00> : vector<8x8xf32>
    %6 = tpu.matmul %5, %0, %cst_6 {dimension_numbers = #tpu.dot_dimension_numbers<[1], [0], [0], [1], [0, 0, 1, 1], [], []>} : vector<8x16xf32>, vector<16x8xf32>, vector<8x8xf32> -> vector<8x8xf32>
    %7 = arith.mulf %4, %4 : vector<8x8xf32>
    %8 = arith.mulf %6, %6 : vector<8x8xf32>
    %9 = arith.addf %7, %8 : vector<8x8xf32>
    %10 = math.sqrt %9 : vector<8x8xf32>
    %cst_7 = arith.constant dense<0.000000e+00> : vector<8xf32>
    %11 = vector.multi_reduction <add>, %10, %cst_7 [0] : vector<8x8xf32> to vector<8xf32>
    %12 = vector.shape_cast %11 : vector<8xf32> to vector<1x8xf32>
    %c0_8 = arith.constant 0 : index
    %c0_9 = arith.constant 0 : index
    %13 = vector.load %arg16[%c0_8, %c0_9] : memref<8x8xf32, #tpu.memory_space<vmem>>, vector<8x8xf32>
    tpu.vector_store %arg16[%c0_8, %c0_9], %10 {strides = array<i32>} : memref<8x8xf32, #tpu.memory_space<vmem>>, vector<8x8xf32>,
    %cst_10 = arith.constant 0.000000e+00 : f32
    %14 = vector.broadcast %cst_10 : f32 to vector<8x8xf32>
    %c0_i32 = arith.constant 0 : i32
    %c8_i32 = arith.constant 8 : i32
    %15 = arith.addi %c0_i32, %c8_i32 : i32
    %c1_i32 = arith.constant 1 : i32
    %16 = scf.for %arg17 = %c0_i32 to %15 step %c1_i32 iter_args(%arg18 = %14) -> (vector<8x8xf32>)  : i32 {
      %90 = arith.index_cast %arg17 : i32 to index
      %c0_55 = arith.constant 0 : index
      %91 = vector.load %arg16[%90, %c0_55] : memref<8x8xf32, #tpu.memory_space<vmem>>, vector<1x8xf32>
      %92 = vector.broadcast %91 : vector<1x8xf32> to vector<8x8xf32>
      %93 = arith.cmpf oge, %92, %10 : vector<8x8xf32>
      %cst_56 = arith.constant 0.000000e+00 : f32
      %94 = vector.shape_cast %91 : vector<1x8xf32> to vector<1x8xf32>
      %95 = vector.broadcast %94 : vector<1x8xf32> to vector<8x8xf32>
      %96 = vector.broadcast %cst_56 : f32 to vector<8x8xf32>
      %97 = arith.select %93, %95, %96 : vector<8x8xi1>, vector<8x8xf32>
      %98 = arith.addf %arg18, %97 : vector<8x8xf32>
      scf.yield %98 : vector<8x8xf32>
    }
    %c8_i32_11 = arith.constant 8 : i32
    %cst_12 = arith.constant 9.99999993E-9 : f32
    %17 = vector.broadcast %cst_12 : f32 to vector<1x8xf32>
    %18 = arith.maximumf %12, %17 : vector<1x8xf32>
    %19 = tpu.reciprocal %18 {approx = true} : vector<1x8xf32> -> vector<1x8xf32>
    %20 = arith.mulf %18, %19 : vector<1x8xf32>
    %cst_13 = arith.constant 2.000000e+00 : f32
    %21 = vector.broadcast %cst_13 : f32 to vector<1x8xf32>
    %22 = arith.subf %21, %20 : vector<1x8xf32>
    %23 = arith.mulf %19, %22 : vector<1x8xf32>
    %cst_14 = arith.constant 9.000000e+00 : f32
    %24 = vector.broadcast %cst_14 : f32 to vector<1x8xf32>
    %25 = arith.mulf %24, %12 : vector<1x8xf32>
    %cst_15 = arith.constant dense<0.000000e+00> : vector<8xf32>
    %26 = vector.multi_reduction <add>, %16, %cst_15 [0] : vector<8x8xf32> to vector<8xf32>
    %27 = vector.shape_cast %26 : vector<8xf32> to vector<1x8xf32>
    %28 = arith.subf %25, %27 : vector<1x8xf32>
    %29 = arith.mulf %28, %23 : vector<1x8xf32>
    %cst_16 = arith.constant 1.250000e-01 : f32
    %30 = vector.broadcast %cst_16 : f32 to vector<1x8xf32>
    %31 = arith.mulf %29, %30 : vector<1x8xf32>
    %cst_17 = arith.constant 2.000000e+00 : f32
    %32 = vector.broadcast %cst_17 : f32 to vector<1x8xf32>
    %33 = arith.mulf %32, %31 : vector<1x8xf32>
    %cst_18 = arith.constant 1.000000e+00 : f32
    %34 = vector.broadcast %cst_18 : f32 to vector<1x8xf32>
    %35 = arith.subf %34, %33 : vector<1x8xf32>
    %c0_19 = arith.constant 0 : index
    %c0_20 = arith.constant 0 : index
    %36 = vector.load %arg2[%c0_19, %c0_20] : memref<1x8xf32, #tpu.memory_space<vmem>>, vector<1x8xf32>
    %37 = arith.negf %36 : vector<1x8xf32>
    %38 = math.exp %37 : vector<1x8xf32>
    %cst_21 = arith.constant 1.000000e+00 : f32
    %39 = vector.broadcast %cst_21 : f32 to vector<1x8xf32>
    %40 = arith.addf %39, %38 : vector<1x8xf32>
    %41 = arith.divf %39, %40 : vector<1x8xf32>
    %cst_22 = arith.constant 1.000000e+00 : f32
    %42 = vector.broadcast %cst_22 : f32 to vector<1x8xf32>
    %43 = arith.subf %42, %41 : vector<1x8xf32>
    %44 = arith.mulf %41, %35 : vector<1x8xf32>
    %45 = arith.addf %43, %44 : vector<1x8xf32>
    %46 = arith.mulf %45, %12 : vector<1x8xf32>
    %47 = vector.broadcast %46 : vector<1x8xf32> to vector<8x8xf32>
    %48 = arith.subf %47, %16 : vector<8x8xf32>
    %49 = arith.negf %48 : vector<8x8xf32>
    %50 = math.exp %49 : vector<8x8xf32>
    %cst_23 = arith.constant 1.000000e+00 : f32
    %51 = vector.broadcast %cst_23 : f32 to vector<8x8xf32>
    %52 = arith.addf %51, %50 : vector<8x8xf32>
    %53 = arith.divf %51, %52 : vector<8x8xf32>
    %54 = arith.mulf %4, %53 : vector<8x8xf32>
    %55 = arith.mulf %6, %53 : vector<8x8xf32>
    %c0_24 = arith.constant 0 : index
    %c0_25 = arith.constant 0 : index
    %56 = vector.load %arg5[%c0_24, %c0_25] : memref<16x8xf32, #tpu.memory_space<vmem>>, vector<16x8xf32>
    %cst_26 = arith.constant dense<0.000000e+00> : vector<16x8xf32>
    %57 = tpu.matmul %56, %54, %cst_26 {dimension_numbers = #tpu.dot_dimension_numbers<[1], [0], [0], [1], [0, 0, 1, 1], [], []>} : vector<16x8xf32>, vector<8x8xf32>, vector<16x8xf32> -> vector<16x8xf32>
    %c0_27 = arith.constant 0 : index
    %c0_28 = arith.constant 0 : index
    %58 = vector.load %arg6[%c0_27, %c0_28] : memref<16x8xf32, #tpu.memory_space<vmem>>, vector<16x8xf32>
    %cst_29 = arith.constant dense<0.000000e+00> : vector<16x8xf32>
    %59 = tpu.matmul %58, %55, %cst_29 {dimension_numbers = #tpu.dot_dimension_numbers<[1], [0], [0], [1], [0, 0, 1, 1], [], []>} : vector<16x8xf32>, vector<8x8xf32>, vector<16x8xf32> -> vector<16x8xf32>
    %60 = arith.addf %57, %59 : vector<16x8xf32>
    %cst_30 = arith.constant 6.250000e-02 : f32
    %61 = vector.broadcast %cst_30 : f32 to vector<1x8xf32>
    %62 = arith.mulf %2, %61 : vector<1x8xf32>
    %63 = vector.broadcast %62 : vector<1x8xf32> to vector<16x8xf32>
    %64 = arith.addf %60, %63 : vector<16x8xf32>
    %65 = arith.subf %0, %64 : vector<16x8xf32>
    %c0_31 = arith.constant 0 : index
    %c0_32 = arith.constant 0 : index
    %66 = vector.load %arg14[%c0_31, %c0_32] : memref<16x8xf32, #tpu.memory_space<vmem>>, vector<16x8xf32>
    tpu.vector_store %arg14[%c0_31, %c0_32], %65 {strides = array<i32>} : memref<16x8xf32, #tpu.memory_space<vmem>>, vector<16x8xf32>,
    %c0_33 = arith.constant 0 : index
    %c0_34 = arith.constant 0 : index
    %67 = vector.load %arg7[%c0_33, %c0_34] : memref<64x16xf32, #tpu.memory_space<vmem>>, vector<64x16xf32>
    %cst_35 = arith.constant dense<0.000000e+00> : vector<64x8xf32>
    %68 = tpu.matmul %67, %64, %cst_35 {dimension_numbers = #tpu.dot_dimension_numbers<[1], [0], [0], [1], [0, 0, 1, 1], [], []>} : vector<64x16xf32>, vector<16x8xf32>, vector<64x8xf32> -> vector<64x8xf32>
    %c0_36 = arith.constant 0 : index
    %c0_37 = arith.constant 0 : index
    %69 = vector.load %arg8[%c0_36, %c0_37] : memref<64x1xf32, #tpu.memory_space<vmem>>, vector<64x1xf32>
    %70 = vector.broadcast %69 : vector<64x1xf32> to vector<64x8xf32>
    %71 = arith.addf %68, %70 : vector<64x8xf32>
    %cst_38 = arith.constant 0.000000e+00 : f32
    %72 = vector.broadcast %cst_38 : f32 to vector<64x8xf32>
    %73 = arith.maximumf %71, %72 : vector<64x8xf32>
    %c0_39 = arith.constant 0 : index
    %c0_40 = arith.constant 0 : index
    %74 = vector.load %arg9[%c0_39, %c0_40] : memref<128x64xf32, #tpu.memory_space<vmem>>, vector<128x64xf32>
    %cst_41 = arith.constant dense<0.000000e+00> : vector<128x8xf32>
    %75 = tpu.matmul %74, %73, %cst_41 {dimension_numbers = #tpu.dot_dimension_numbers<[1], [0], [0], [1], [0, 0, 1, 1], [], []>} : vector<128x64xf32>, vector<64x8xf32>, vector<128x8xf32> -> vector<128x8xf32>
    %c0_42 = arith.constant 0 : index
    %c0_43 = arith.constant 0 : index
    %76 = vector.load %arg10[%c0_42, %c0_43] : memref<128x16xf32, #tpu.memory_space<vmem>>, vector<128x16xf32>
    %cst_44 = arith.constant dense<0.000000e+00> : vector<128x8xf32>
    %77 = tpu.matmul %76, %0, %cst_44 {dimension_numbers = #tpu.dot_dimension_numbers<[1], [0], [0], [1], [0, 0, 1, 1], [], []>} : vector<128x16xf32>, vector<16x8xf32>, vector<128x8xf32> -> vector<128x8xf32>
    %78 = arith.addf %75, %77 : vector<128x8xf32>
    %c0_45 = arith.constant 0 : index
    %c0_46 = arith.constant 0 : index
    %79 = vector.load %arg11[%c0_45, %c0_46] : memref<128x1xf32, #tpu.memory_space<vmem>>, vector<128x1xf32>
    %80 = vector.broadcast %79 : vector<128x1xf32> to vector<128x8xf32>
    %81 = arith.addf %78, %80 : vector<128x8xf32>
    %cst_47 = arith.constant 0.000000e+00 : f32
    %82 = vector.broadcast %cst_47 : f32 to vector<128x8xf32>
    %83 = arith.maximumf %81, %82 : vector<128x8xf32>
    %c0_48 = arith.constant 0 : index
    %c0_49 = arith.constant 0 : index
    %84 = vector.load %arg12[%c0_48, %c0_49] : memref<8x128xf32, #tpu.memory_space<vmem>>, vector<8x128xf32>
    %cst_50 = arith.constant dense<0.000000e+00> : vector<8x8xf32>
    %85 = tpu.matmul %84, %83, %cst_50 {dimension_numbers = #tpu.dot_dimension_numbers<[1], [0], [0], [1], [0, 0, 1, 1], [], []>} : vector<8x128xf32>, vector<128x8xf32>, vector<8x8xf32> -> vector<8x8xf32>
    %c0_51 = arith.constant 0 : index
    %c0_52 = arith.constant 0 : index
    %86 = vector.load %arg13[%c0_51, %c0_52] : memref<8x1xf32, #tpu.memory_space<vmem>>, vector<8x1xf32>
    %87 = vector.broadcast %86 : vector<8x1xf32> to vector<8x8xf32>
    %88 = arith.addf %85, %87 : vector<8x8xf32>
    %c0_53 = arith.constant 0 : index
    %c0_54 = arith.constant 0 : index
    %89 = vector.load %arg15[%c0_53, %c0_54] : memref<8x8xf32, #tpu.memory_space<vmem>>, vector<8x8xf32>
    tpu.vector_store %arg15[%c0_53, %c0_54], %88 {strides = array<i32>} : memref<8x8xf32, #tpu.memory_space<vmem>>, vector<8x8xf32>,
    return
  }
  func.func @transform_0(%arg0: i32) -> (i32, i32) {
    %c0_i32 = arith.constant 0 : i32
    %c0_i32_0 = arith.constant 0 : i32
    return %c0_i32, %arg0 : i32, i32
  }
  func.func @transform_1(%arg0: i32) -> (i32, i32) {
    %c0_i32 = arith.constant 0 : i32
    %c0_i32_0 = arith.constant 0 : i32
    return %c0_i32, %arg0 : i32, i32
  }
  func.func @transform_2(%arg0: i32) -> (i32, i32) {
    %c0_i32 = arith.constant 0 : i32
    %c0_i32_0 = arith.constant 0 : i32
    %c0_i32_1 = arith.constant 0 : i32
    return %c0_i32, %c0_i32_0 : i32, i32
  }
  func.func @transform_3(%arg0: i32) -> (i32, i32) {
    %c0_i32 = arith.constant 0 : i32
    %c0_i32_0 = arith.constant 0 : i32
    %c0_i32_1 = arith.constant 0 : i32
    return %c0_i32, %c0_i32_0 : i32, i32
  }
  func.func @transform_4(%arg0: i32) -> (i32, i32) {
    %c0_i32 = arith.constant 0 : i32
    %c0_i32_0 = arith.constant 0 : i32
    %c0_i32_1 = arith.constant 0 : i32
    return %c0_i32, %c0_i32_0 : i32, i32
  }
  func.func @transform_5(%arg0: i32) -> (i32, i32) {
    %c0_i32 = arith.constant 0 : i32
    %c0_i32_0 = arith.constant 0 : i32
    %c0_i32_1 = arith.constant 0 : i32
    return %c0_i32, %c0_i32_0 : i32, i32
  }
  func.func @transform_6(%arg0: i32) -> (i32, i32) {
    %c0_i32 = arith.constant 0 : i32
    %c0_i32_0 = arith.constant 0 : i32
    %c0_i32_1 = arith.constant 0 : i32
    return %c0_i32, %c0_i32_0 : i32, i32
  }
  func.func @transform_7(%arg0: i32) -> (i32, i32) {
    %c0_i32 = arith.constant 0 : i32
    %c0_i32_0 = arith.constant 0 : i32
    %c0_i32_1 = arith.constant 0 : i32
    return %c0_i32, %c0_i32_0 : i32, i32
  }
  func.func @transform_8(%arg0: i32) -> (i32, i32) {
    %c0_i32 = arith.constant 0 : i32
    %c0_i32_0 = arith.constant 0 : i32
    %c0_i32_1 = arith.constant 0 : i32
    return %c0_i32, %c0_i32_0 : i32, i32
  }
  func.func @transform_9(%arg0: i32) -> (i32, i32) {
    %c0_i32 = arith.constant 0 : i32
    %c0_i32_0 = arith.constant 0 : i32
    %c0_i32_1 = arith.constant 0 : i32
    return %c0_i32, %c0_i32_0 : i32, i32
  }
  func.func @transform_10(%arg0: i32) -> (i32, i32) {
    %c0_i32 = arith.constant 0 : i32
    %c0_i32_0 = arith.constant 0 : i32
    %c0_i32_1 = arith.constant 0 : i32
    return %c0_i32, %c0_i32_0 : i32, i32
  }
  func.func @transform_11(%arg0: i32) -> (i32, i32) {
    %c0_i32 = arith.constant 0 : i32
    %c0_i32_0 = arith.constant 0 : i32
    %c0_i32_1 = arith.constant 0 : i32
    return %c0_i32, %c0_i32_0 : i32, i32
  }
  func.func @transform_12(%arg0: i32) -> (i32, i32) {
    %c0_i32 = arith.constant 0 : i32
    %c0_i32_0 = arith.constant 0 : i32
    %c0_i32_1 = arith.constant 0 : i32
    return %c0_i32, %c0_i32_0 : i32, i32
  }
  func.func @transform_13(%arg0: i32) -> (i32, i32) {
    %c0_i32 = arith.constant 0 : i32
    %c0_i32_0 = arith.constant 0 : i32
    return %c0_i32, %arg0 : i32, i32
  }
  func.func @transform_14(%arg0: i32) -> (i32, i32) {
    %c0_i32 = arith.constant 0 : i32
    %c0_i32_0 = arith.constant 0 : i32
    return %c0_i32, %arg0 : i32, i32
  }
}

</mosaic_0001>

<llo_original>
// kernel: tpu_custom_call.1
$region0: #{tpu_custom_call.1}
  #allocation0 [shape = 'u32[]', space=smem, size = 0x4, offset = 0x4, fixed_abs, tag = 'smem constant byte address 0x4 - core index']
  #allocation1 [shape = 'u32[72,128]{1,0:T(1,128)}', space=vmem, size = 0x9000, scoped, tag = 'internal scratch']
  #allocation2 [shape = 'f32[8,8]{1,0:T(8,128)}', space=vmem, size = 0x1000, scoped, tag = 'scratch operand']
  %s0 = inlined_call_operand.vmem [shape: f32[16,8], index: 0, kind: input, shape index: {}]
  %s1 = inlined_call_operand.vmem [shape: f32[1,8], index: 1, kind: input, shape index: {}]
  %s2 = inlined_call_operand.vmem [shape: f32[8,16], index: 2, kind: input, shape index: {}]
  %s3 = inlined_call_operand.vmem [shape: f32[8,16], index: 3, kind: input, shape index: {}]
  %s4 = inlined_call_operand.vmem [shape: f32[16,8], index: 4, kind: input, shape index: {}]
  %s5 = inlined_call_operand.vmem [shape: f32[16,8], index: 5, kind: input, shape index: {}]
  %s6 = inlined_call_operand.vmem [shape: f32[64,16], index: 6, kind: input, shape index: {}]
  %s7 = inlined_call_operand.vmem [shape: f32[64,1], index: 7, kind: input, shape index: {}]
  %s8 = inlined_call_operand.vmem [shape: f32[128,64], index: 8, kind: input, shape index: {}]
  %s9 = inlined_call_operand.vmem [shape: f32[128,16], index: 9, kind: input, shape index: {}]
  %s10 = inlined_call_operand.vmem [shape: f32[128,1], index: 10, kind: input, shape index: {}]
  %s11 = inlined_call_operand.vmem [shape: f32[8,128], index: 11, kind: input, shape index: {}]
  %s12 = inlined_call_operand.vmem [shape: f32[8,1], index: 12, kind: input, shape index: {}]
  %s13 = inlined_call_operand.vmem [shape: f32[16,8], index: 13, kind: output, shape index: {0}]
  %s14 = inlined_call_operand.hbm [shape: f32[8,8], index: 14, kind: output, shape index: {1}]
  %15 = xla_tuple %s13, %s14
  %s16 = sld [smem:[#allocation0]]
  $region77: #{tpu_custom_call.1} parent=0
    _
  %s18 = ssub.s32 1, %s16
  %s19 = scalar_select 0, %s18, %s16
  $region1: #{tpu_custom_call.1} parent=0
    #allocation3 [shape = 'u8[4096]{0}', space=vmem, size = 0x1000, scoped, tag = 'output window, operand 1, single buffered']
    #allocation4 [shape = 's32[1]{0}', space=sflag, size = 0x4, scoped, tag = 'scoped memory for tpu_custom_call.1']
    %20 = vsyncpa [#allocation4], 0
    // Predicated region
    $region2: #{tpu_custom_call.1} parent=1 // pred_check
      _
    $region3: #{tpu_custom_call.1} parent=1 // pred_check_branch
      %22 = sbr.rel (0) target = $region5
    $region4: #{tpu_custom_call.1} parent=1 // pred_region
      _
    $region5: #{tpu_custom_call.1} parent=1 // pred_fallthru
      _
    // Predicated region
    $region6: #{tpu_custom_call.1} parent=1 // pred_check
      _
    $region7: #{tpu_custom_call.1} parent=1 // pred_check_branch
      %24 = sbr.rel (0) target = $region9
    $region8: #{tpu_custom_call.1} parent=1 // pred_region
      _
    $region9: #{tpu_custom_call.1} parent=1 // pred_fallthru
      _
    // Predicated region
    $region10: #{tpu_custom_call.1} parent=1 // pred_check
      _
    $region11: #{tpu_custom_call.1} parent=1 // pred_check_branch
      %26 = sbr.rel (0) target = $region13
    $region12: #{tpu_custom_call.1} parent=1 // pred_region
      _
    $region13: #{tpu_custom_call.1} parent=1 // pred_fallthru
      _
    // Predicated region
    $region14: #{tpu_custom_call.1} parent=1 // pred_check
      _
    $region15: #{tpu_custom_call.1} parent=1 // pred_check_branch
      %28 = sbr.rel (0) target = $region17
    $region16: #{tpu_custom_call.1} parent=1 // pred_region
      _
    $region17: #{tpu_custom_call.1} parent=1 // pred_fallthru
      _
    // Predicated region
    $region18: #{tpu_custom_call.1} parent=1 // pred_check
      _
    $region19: #{tpu_custom_call.1} parent=1 // pred_check_branch
      %30 = sbr.rel (0) target = $region21
    $region20: #{tpu_custom_call.1} parent=1 // pred_region
      _
    $region21: #{tpu_custom_call.1} parent=1 // pred_fallthru
      _
    // Predicated region
    $region22: #{tpu_custom_call.1} parent=1 // pred_check
      _
    $region23: #{tpu_custom_call.1} parent=1 // pred_check_branch
      %32 = sbr.rel (0) target = $region25
    $region24: #{tpu_custom_call.1} parent=1 // pred_region
      _
    $region25: #{tpu_custom_call.1} parent=1 // pred_fallthru
      _
    // Predicated region
    $region26: #{tpu_custom_call.1} parent=1 // pred_check
      _
    $region27: #{tpu_custom_call.1} parent=1 // pred_check_branch
      %34 = sbr.rel (0) target = $region29
    $region28: #{tpu_custom_call.1} parent=1 // pred_region
      _
    $region29: #{tpu_custom_call.1} parent=1 // pred_fallthru
      _
    // Predicated region
    $region30: #{tpu_custom_call.1} parent=1 // pred_check
      _
    $region31: #{tpu_custom_call.1} parent=1 // pred_check_branch
      %36 = sbr.rel (0) target = $region33
    $region32: #{tpu_custom_call.1} parent=1 // pred_region
      _
    $region33: #{tpu_custom_call.1} parent=1 // pred_fallthru
      _
    // Predicated region
    $region34: #{tpu_custom_call.1} parent=1 // pred_check
      _
    $region35: #{tpu_custom_call.1} parent=1 // pred_check_branch
      %38 = sbr.rel (0) target = $region37
    $region36: #{tpu_custom_call.1} parent=1 // pred_region
      _
    $region37: #{tpu_custom_call.1} parent=1 // pred_fallthru
      _
    // Predicated region
    $region38: #{tpu_custom_call.1} parent=1 // pred_check
      _
    $region39: #{tpu_custom_call.1} parent=1 // pred_check_branch
      %40 = sbr.rel (0) target = $region41
    $region40: #{tpu_custom_call.1} parent=1 // pred_region
      _
    $region41: #{tpu_custom_call.1} parent=1 // pred_fallthru
      _
    // Predicated region
    $region42: #{tpu_custom_call.1} parent=1 // pred_check
      _
    $region43: #{tpu_custom_call.1} parent=1 // pred_check_branch
      %42 = sbr.rel (0) target = $region45
    $region44: #{tpu_custom_call.1} parent=1 // pred_region
      _
    $region45: #{tpu_custom_call.1} parent=1 // pred_fallthru
      _
    // Predicated region
    $region46: #{tpu_custom_call.1} parent=1 // pred_check
      _
    $region47: #{tpu_custom_call.1} parent=1 // pred_check_branch
      %44 = sbr.rel (0) target = $region49
    $region48: #{tpu_custom_call.1} parent=1 // pred_region
      _
    $region49: #{tpu_custom_call.1} parent=1 // pred_fallthru
      _
    // Predicated region
    $region50: #{tpu_custom_call.1} parent=1 // pred_check
      _
    $region51: #{tpu_custom_call.1} parent=1 // pred_check_branch
      %46 = sbr.rel (0) target = $region53
    $region52: #{tpu_custom_call.1} parent=1 // pred_region
      _
    $region53: #{tpu_custom_call.1} parent=1 // pred_fallthru
      _
    %v47 = vld [vmem:[%s0] sm:$0xff]
    %v48 = vld [vmem:[%s0 + $0x8] sm:$0xff]
    %vm49 = vcmask 64512
    %v50 = vsel %vm49, %v47, 0.0
    %v51 = vsel %vm49, %v48, 0.0
    %v52 = vadd.f32 %v50, %v51
    %v53 = vrot.slane %v52, 4
    %v54 = vadd.f32 %v52, %v53
    %v55 = vrot.slane %v54, 2
    %v56 = vadd.f32 %v54, %v55
    %v57 = vrot.slane %v56, 1
    %v58 = vadd.f32 %v56, %v57
    %v59 = vld [vmem:[%s2] sm:$0xff]
    %vm60 = vcmask 130048
    %v62 = vsel %vm60, %v59, 0
    %64 = vmatpush.msra.mxu0 0.0
    %65 = vmatpush.msra.mxu0 0.0
    %66 = vmatpush.msra.mxu0 0.0
    %67 = vmatpush.msra.mxu0 0.0
    %68 = vmatpush.msra.mxu0 0.0
    %69 = vmatpush.msra.mxu0 0.0
    %70 = vmatpush.msra.mxu0 0.0
    %71 = vmatpush.msra.mxu0 0.0
    %72 = vmatpush.msra.mxu0 0.0
    %73 = vmatpush.msra.mxu0 0.0
    %74 = vmatpush.msra.mxu0 0.0
    %75 = vmatpush.msra.mxu0 0.0
    %76 = vmatpush.msra.mxu0 0.0
    %77 = vmatpush.msra.mxu0 0.0
    %78 = vmatpush.msra.mxu0 %v48
    %79 = vmatpush.msra.mxu0 %v47
    %80 = vmatmul.f32.gmra.mxu0 %v62
    %v81 = vpop.f32.mrf.mxu0
    %v82 = vadd.f32 0.0, %v81
    %83 = vdwg.mxu0
    %v84 = vld [vmem:[%s3] sm:$0xff]
    %v86 = vsel %vm60, %v84, 0
    %88 = vmatpush.msra.mxu0 0.0
    %89 = vmatpush.msra.mxu0 0.0
    %90 = vmatpush.msra.mxu0 0.0
    %91 = vmatpush.msra.mxu0 0.0
    %92 = vmatpush.msra.mxu0 0.0
    %93 = vmatpush.msra.mxu0 0.0
    %94 = vmatpush.msra.mxu0 0.0
    %95 = vmatpush.msra.mxu0 0.0
    %96 = vmatpush.msra.mxu0 0.0
    %97 = vmatpush.msra.mxu0 0.0
    %98 = vmatpush.msra.mxu0 0.0
    %99 = vmatpush.msra.mxu0 0.0
    %100 = vmatpush.msra.mxu0 0.0
    %101 = vmatpush.msra.mxu0 0.0
    %102 = vmatpush.msra.mxu0 %v48
    %103 = vmatpush.msra.mxu0 %v47
    %104 = vmatmul.f32.gmra.mxu0 %v86
    %v105 = vpop.f32.mrf.mxu0
    %v106 = vadd.f32 0.0, %v105
    %107 = vdwg.mxu0
    %v108 = vmul.f32 %v82, %v82
    %v109 = vmul.f32 %v106, %v106
    %v110 = vadd.f32 %v108, %v109
    %v111 = vrsqrt.pop %v110
    %v112 = vmul.f32 %v111, %v110
    %v113 = vmul.f32 %v112, %v111
    %v114 = vmul.f32 0.5, %v113
    %v115 = vsub.f32 1.5, %v114
    %v116 = vmul.f32 %v111, %v115
    %v117 = vmul.f32 %v110, %v116
    %vm118 = vcmp.eq.f32.partialorder %v110, inf
    %v119 = vsel %vm118, %v110, %v117
    %vm120 = vcmp.eq.f32.partialorder %v110, 0.0
    %v121 = vand.u32 %v110, 2147483648
    %v122 = vsel %vm120, %v121, %v119
    %v123 = vsel %vm49, %v122, 0.0
    %v124 = vrot.slane %v123, 4
    %v125 = vadd.f32 %v123, %v124
    %v126 = vrot.slane %v125, 2
    %v127 = vadd.f32 %v125, %v126
    %v128 = vrot.slane %v127, 1
    %v129 = vadd.f32 %v127, %v128
    %130 = vst.msk [vmem:[#allocation2] sm:$0xff] %vm49, %v122
    loop: start=0, step=1, limit=8
    $region54: #{tpu_custom_call.1} parent=1 // loop_pre_header
      _
    $region55: #{tpu_custom_call.1} parent=1 // loop_header
      %s132 = sphi 0, %s136
      %p133 = scmp.ge.s32.totalorder %s132, 8
      %v137 = vphi 0.0, %v143
    $region56: #{tpu_custom_call.1} parent=1 // loop_header_branch
      %135 = sbr.rel (%p133) target = $region60
    $region57: #{tpu_custom_call.1} parent=1 // loop_body
      %s138 = scalar_lea.vmem [#allocation2], %s132
      %v139 = vld [vmem:[%s138] sm:$0x1]
      %v140 = vperm.slane %v139, 0
      %vm141 = vcmp.ge.f32.partialorder %v140, %v122
      %v142 = vsel %vm141, %v140, 0.0
      %v143 = vadd.f32 %v137, %v142
    $region58: #{tpu_custom_call.1} parent=1 // loop_footer
      %s136 = sadd.s32 1, %s132
    $region59: #{tpu_custom_call.1} parent=1 // loop_footer_branch
      %131 = sbr.rel target = $region55
    $region60: #{tpu_custom_call.1} parent=1 // loop_exit
      _
    %v144 = vmax.f32 %v129, 1e-08
    %v145 = vrcp.pop %v144
    %v146 = vmul.f32 %v144, %v145
    %v147 = vsub.f32 2.0, %v146
    %v148 = vmul.f32 %v145, %v147
    %v149 = vmul.f32 %v129, 9.0
    %v150 = vsel %vm49, %v137, 0.0
    %v151 = vrot.slane %v150, 4
    %v152 = vadd.f32 %v150, %v151
    %v153 = vrot.slane %v152, 2
    %v154 = vadd.f32 %v152, %v153
    %v155 = vrot.slane %v154, 1
    %v156 = vadd.f32 %v154, %v155
    %v157 = vsub.f32 %v149, %v156
    %v158 = vmul.f32 %v157, %v148
    %v159 = vmul.f32 %v158, 0.125
    %v160 = vmul.f32 %v159, 2.0
    %v161 = vsub.f32 1.0, %v160
    %v162 = vld [vmem:[%s1] sm:$0x1]
    %v163 = vxor.u32 %v162, 2147483648
    %v164 = vmul.f32 %v163, 1.442695
    %v165 = vpow.pop %v164
    %v166 = vadd.f32 %v165, 1.0
    %v167 = vrcp.pop %v166
    %v168 = vmul.f32 %v166, %v167
    %v169 = vsub.f32 1.0, %v168
    %v170 = vmul.f32 %v167, %v169
    %v171 = vadd.f32 %v167, %v170
    %vm172 = vweird.f32 %v166
    %vm173 = vweird.f32 %v167
    %vm174 = vmor %vm172, %vm173
    %v175 = vsel %vm174, %v167, %v171
    %v176 = vand.u32 2147483647, %v166
    %vm177 = vcmp.eq.f32.partialorder %v176, 8.507059e+37
    %v178 = vand.u32 %v166, 2147483648
    %v179 = vor.u32 1.1754944e-38, %v178
    %v180 = vsel %vm177, %v179, %v175
    %v181 = vmul.f32 1.0, %v180
    %v182 = vsub.f32 1.0, %v181
    %v183 = vmul.f32 %v181, %v161
    %v184 = vadd.f32 %v182, %v183
    %v185 = vmul.f32 %v184, %v129
    %v187 = vperm.slane %v185, 0
    %v189 = vsub.f32 %v187, %v137
    %v190 = vxor.u32 %v189, 2147483648
    %v191 = vmul.f32 %v190, 1.442695
    %v192 = vpow.pop %v191
    %v193 = vadd.f32 %v192, 1.0
    %v194 = vrcp.pop %v193
    %v195 = vmul.f32 %v193, %v194
    %v196 = vsub.f32 1.0, %v195
    %v197 = vmul.f32 %v194, %v196
    %v198 = vadd.f32 %v194, %v197
    %vm199 = vweird.f32 %v193
    %vm200 = vweird.f32 %v194
    %vm201 = vmor %vm199, %vm200
    %v202 = vsel %vm201, %v194, %v198
    %v203 = vand.u32 2147483647, %v193
    %vm204 = vcmp.eq.f32.partialorder %v203, 8.507059e+37
    %v205 = vand.u32 %v193, 2147483648
    %v206 = vor.u32 1.1754944e-38, %v205
    %v207 = vsel %vm204, %v206, %v202
    %v208 = vmul.f32 1.0, %v207
    %v209 = vmul.f32 %v82, %v208
    %v210 = vmul.f32 %v106, %v208
    %v211 = vld [vmem:[%s4] sm:$0xff]
    %v212 = vld [vmem:[%s4 + $0x8] sm:$0xff]
    %v213 = vld [vmem:[%s5] sm:$0xff]
    %v214 = vld [vmem:[%s5 + $0x8] sm:$0xff]
    %v216 = vsel %vm49, %v213, 0
    %v219 = vsel %vm49, %v214, 0
    %221 = vmatpush.msra.mxu0 0.0
    %222 = vmatpush.msra.mxu0 0.0
    %223 = vmatpush.msra.mxu0 0.0
    %224 = vmatpush.msra.mxu0 0.0
    %225 = vmatpush.msra.mxu0 0.0
    %226 = vmatpush.msra.mxu0 0.0
    %227 = vmatpush.msra.mxu0 0.0
    %228 = vmatpush.msra.mxu0 0.0
    %229 = vmatpush.msra.mxu0 0.0
    %230 = vmatpush.msra.mxu0 0.0
    %231 = vmatpush.msra.mxu0 0.0
    %232 = vmatpush.msra.mxu0 0.0
    %233 = vmatpush.msra.mxu0 0.0
    %234 = vmatpush.msra.mxu0 0.0
    %235 = vmatpush.msra.mxu0 0.0
    %236 = vmatpush.msra.mxu0 %v210
    %237 = vmatmul.f32.gmra.mxu0 %v216
    %v238 = vpop.f32.mrf.mxu0
    %v239 = vadd.f32 0.0, %v238
    %240 = vmatmul.f32.gmra.mxu0 %v219
    %v241 = vpop.f32.mrf.mxu0
    %v242 = vadd.f32 0.0, %v241
    %243 = vdwg.mxu0
    %v245 = vsel %vm49, %v211, 0
    %v248 = vsel %vm49, %v212, 0
    %250 = vmatpush.msra.mxu0 0.0
    %251 = vmatpush.msra.mxu0 0.0
    %252 = vmatpush.msra.mxu0 0.0
    %253 = vmatpush.msra.mxu0 0.0
    %254 = vmatpush.msra.mxu0 0.0
    %255 = vmatpush.msra.mxu0 0.0
    %256 = vmatpush.msra.mxu0 0.0
    %257 = vmatpush.msra.mxu0 0.0
    %258 = vmatpush.msra.mxu0 0.0
    %259 = vmatpush.msra.mxu0 0.0
    %260 = vmatpush.msra.mxu0 0.0
    %261 = vmatpush.msra.mxu0 0.0
    %262 = vmatpush.msra.mxu0 0.0
    %263 = vmatpush.msra.mxu0 0.0
    %264 = vmatpush.msra.mxu0 0.0
    %265 = vmatpush.msra.mxu0 %v209
    %266 = vmatmul.f32.gmra.mxu0 %v245
    %v267 = vpop.f32.mrf.mxu0
    %v268 = vadd.f32 %v239, %v267
    %269 = vmatmul.f32.gmra.mxu0 %v248
    %v270 = vpop.f32.mrf.mxu0
    %v271 = vadd.f32 %v242, %v270
    %272 = vdwg.mxu0
    %v273 = vmul.f32 %v58, 0.0625
    %v274 = vadd.f32 %v268, %v273
    %v275 = vadd.f32 %v271, %v273
    %v276 = vsub.f32 %v47, %v274
    %v277 = vsub.f32 %v48, %v275
    %278 = vst.msk [vmem:[%s13] sm:$0xff] %vm49, %v276
    %279 = vst.msk [vmem:[%s13 + $0x8] sm:$0xff] %vm49, %v277
    %v280 = vld [vmem:[%s6] sm:$0xff]
    %v281 = vld [vmem:[%s6 + $0x8] sm:$0xff]
    %v282 = vld [vmem:[%s6 + $0x10] sm:$0xff]
    %v283 = vld [vmem:[%s6 + $0x18] sm:$0xff]
    %v284 = vld [vmem:[%s6 + $0x20] sm:$0xff]
    %v285 = vld [vmem:[%s6 + $0x28] sm:$0xff]
    %v286 = vld [vmem:[%s6 + $0x30] sm:$0xff]
    %v287 = vld [vmem:[%s6 + $0x38] sm:$0xff]
    %v288 = vld [vmem:[%s7] sm:$0xff]
    %v289 = vld [vmem:[%s7 + $0x8] sm:$0xff]
    %v290 = vld [vmem:[%s7 + $0x10] sm:$0xff]
    %v291 = vld [vmem:[%s7 + $0x18] sm:$0xff]
    %v292 = vld [vmem:[%s7 + $0x20] sm:$0xff]
    %v293 = vld [vmem:[%s7 + $0x28] sm:$0xff]
    %v294 = vld [vmem:[%s7 + $0x30] sm:$0xff]
    %v295 = vld [vmem:[%s7 + $0x38] sm:$0xff]
    %297 = vset.pattern.permute.xlu0 0
    %298 = vperm.xlu0 %297, %v288
    %v299 = vpop.permute.xlu0 %298
    %302 = vset.pattern.permute.xlu0 0
    %303 = vperm.xlu0 %302, %v289
    %v304 = vpop.permute.xlu0 %303
    %307 = vset.pattern.permute.xlu0 0
    %308 = vperm.xlu0 %307, %v290
    %v309 = vpop.permute.xlu0 %308
    %312 = vset.pattern.permute.xlu0 0
    %313 = vperm.xlu0 %312, %v291
    %v314 = vpop.permute.xlu0 %313
    %317 = vset.pattern.permute.xlu0 0
    %318 = vperm.xlu0 %317, %v292
    %v319 = vpop.permute.xlu0 %318
    %322 = vset.pattern.permute.xlu0 0
    %323 = vperm.xlu0 %322, %v293
    %v324 = vpop.permute.xlu0 %323
    %327 = vset.pattern.permute.xlu0 0
    %328 = vperm.xlu0 %327, %v294
    %v329 = vpop.permute.xlu0 %328
    %332 = vset.pattern.permute.xlu0 0
    %333 = vperm.xlu0 %332, %v295
    %v334 = vpop.permute.xlu0 %333
    %v337 = vsel %vm60, %v280, 0
    %v340 = vsel %vm60, %v281, 0
    %v343 = vsel %vm60, %v282, 0
    %v346 = vsel %vm60, %v283, 0
    %v349 = vsel %vm60, %v284, 0
    %v352 = vsel %vm60, %v285, 0
    %v355 = vsel %vm60, %v286, 0
    %v358 = vsel %vm60, %v287, 0
    %360 = vmatpush.msra.mxu0 0.0
    %361 = vmatpush.msra.mxu0 0.0
    %362 = vmatpush.msra.mxu0 0.0
    %363 = vmatpush.msra.mxu0 0.0
    %364 = vmatpush.msra.mxu0 0.0
    %365 = vmatpush.msra.mxu0 0.0
    %366 = vmatpush.msra.mxu0 0.0
    %367 = vmatpush.msra.mxu0 0.0
    %368 = vmatpush.msra.mxu0 0.0
    %369 = vmatpush.msra.mxu0 0.0
    %370 = vmatpush.msra.mxu0 0.0
    %371 = vmatpush.msra.mxu0 0.0
    %372 = vmatpush.msra.mxu0 0.0
    %373 = vmatpush.msra.mxu0 0.0
    %374 = vmatpush.msra.mxu0 %v275
    %375 = vmatpush.msra.mxu0 %v274
    %376 = vmatmul.f32.gmra.mxu0 %v337
    %v377 = vpop.f32.mrf.mxu0
    %v378 = vadd.f32 %v299, %v377
    %379 = vmatmul.f32.gmra.mxu0 %v340
    %v380 = vpop.f32.mrf.mxu0
    %v381 = vadd.f32 %v304, %v380
    %382 = vmatmul.f32.gmra.mxu0 %v343
    %v383 = vpop.f32.mrf.mxu0
    %v384 = vadd.f32 %v309, %v383
    %385 = vmatmul.f32.gmra.mxu0 %v346
    %v386 = vpop.f32.mrf.mxu0
    %v387 = vadd.f32 %v314, %v386
    %388 = vmatmul.f32.gmra.mxu0 %v349
    %v389 = vpop.f32.mrf.mxu0
    %v390 = vadd.f32 %v319, %v389
    %391 = vmatmul.f32.gmra.mxu0 %v352
    %v392 = vpop.f32.mrf.mxu0
    %v393 = vadd.f32 %v324, %v392
    %394 = vmatmul.f32.gmra.mxu0 %v355
    %v395 = vpop.f32.mrf.mxu0
    %v396 = vadd.f32 %v329, %v395
    %397 = vmatmul.f32.gmra.mxu0 %v358
    %v398 = vpop.f32.mrf.mxu0
    %v399 = vadd.f32 %v334, %v398
    %400 = vdwg.mxu0
    %v401 = vmax.f32 %v378, 0.0
    %v402 = vmax.f32 %v381, 0.0
    %v403 = vmax.f32 %v384, 0.0
    %v404 = vmax.f32 %v387, 0.0
    %v405 = vmax.f32 %v390, 0.0
    %v406 = vmax.f32 %v393, 0.0
    %v407 = vmax.f32 %v396, 0.0
    %v408 = vmax.f32 %v399, 0.0
    %v409 = vld [vmem:[%s8] sm:$0xff]
    %v410 = vld [vmem:[%s8 + $0x8] sm:$0xff]
    %v411 = vld [vmem:[%s8 + $0x10] sm:$0xff]
    %v412 = vld [vmem:[%s8 + $0x18] sm:$0xff]
    %v413 = vld [vmem:[%s8 + $0x20] sm:$0xff]
    %v414 = vld [vmem:[%s8 + $0x28] sm:$0xff]
    %v415 = vld [vmem:[%s8 + $0x30] sm:$0xff]
    %v416 = vld [vmem:[%s8 + $0x38] sm:$0xff]
    %v417 = vld [vmem:[%s8 + $0x40] sm:$0xff]
    %v418 = vld [vmem:[%s8 + $0x48] sm:$0xff]
    %v419 = vld [vmem:[%s8 + $0x50] sm:$0xff]
    %v420 = vld [vmem:[%s8 + $0x58] sm:$0xff]
    %v421 = vld [vmem:[%s8 + $0x60] sm:$0xff]
    %v422 = vld [vmem:[%s8 + $0x68] sm:$0xff]
    %v423 = vld [vmem:[%s8 + $0x70] sm:$0xff]
    %v424 = vld [vmem:[%s8 + $0x78] sm:$0xff]
    %v425 = vld [vmem:[%s9] sm:$0xff]
    %v426 = vld [vmem:[%s9 + $0x8] sm:$0xff]
    %v427 = vld [vmem:[%s9 + $0x10] sm:$0xff]
    %v428 = vld [vmem:[%s9 + $0x18] sm:$0xff]
    %v429 = vld [vmem:[%s9 + $0x20] sm:$0xff]
    %v430 = vld [vmem:[%s9 + $0x28] sm:$0xff]
    %v431 = vld [vmem:[%s9 + $0x30] sm:$0xff]
    %v432 = vld [vmem:[%s9 + $0x38] sm:$0xff]
    %v433 = vld [vmem:[%s9 + $0x40] sm:$0xff]
    %v434 = vld [vmem:[%s9 + $0x48] sm:$0xff]
    %v435 = vld [vmem:[%s9 + $0x50] sm:$0xff]
    %v436 = vld [vmem:[%s9 + $0x58] sm:$0xff]
    %v437 = vld [vmem:[%s9 + $0x60] sm:$0xff]
    %v438 = vld [vmem:[%s9 + $0x68] sm:$0xff]
    %v439 = vld [vmem:[%s9 + $0x70] sm:$0xff]
    %v440 = vld [vmem:[%s9 + $0x78] sm:$0xff]
    %v442 = vsel %vm60, %v425, 0
    %v445 = vsel %vm60, %v426, 0
    %v448 = vsel %vm60, %v427, 0
    %v451 = vsel %vm60, %v428, 0
    %v454 = vsel %vm60, %v429, 0
    %v457 = vsel %vm60, %v430, 0
    %v460 = vsel %vm60, %v431, 0
    %v463 = vsel %vm60, %v432, 0
    %v466 = vsel %vm60, %v433, 0
    %v469 = vsel %vm60, %v434, 0
    %v472 = vsel %vm60, %v435, 0
    %v475 = vsel %vm60, %v436, 0
    %v478 = vsel %vm60, %v437, 0
    %v481 = vsel %vm60, %v438, 0
    %v484 = vsel %vm60, %v439, 0
    %v487 = vsel %vm60, %v440, 0
    %489 = vmatpush.msra.mxu0 0.0
    %490 = vmatpush.msra.mxu0 0.0
    %491 = vmatpush.msra.mxu0 0.0
    %492 = vmatpush.msra.mxu0 0.0
    %493 = vmatpush.msra.mxu0 0.0
    %494 = vmatpush.msra.mxu0 0.0
    %495 = vmatpush.msra.mxu0 0.0
    %496 = vmatpush.msra.mxu0 0.0
    %497 = vmatpush.msra.mxu0 0.0
    %498 = vmatpush.msra.mxu0 0.0
    %499 = vmatpush.msra.mxu0 0.0
    %500 = vmatpush.msra.mxu0 0.0
    %501 = vmatpush.msra.mxu0 0.0
    %502 = vmatpush.msra.mxu0 0.0
    %503 = vmatpush.msra.mxu0 %v48
    %504 = vmatpush.msra.mxu0 %v47
    %505 = vmatmul.f32.gmra.mxu0 %v442
    %v506 = vpop.f32.mrf.mxu0
    %v507 = vadd.f32 0.0, %v506
    %508 = vmatmul.f32.gmra.mxu0 %v445
    %v509 = vpop.f32.mrf.mxu0
    %v510 = vadd.f32 0.0, %v509
    %511 = vmatmul.f32.gmra.mxu0 %v448
    %v512 = vpop.f32.mrf.mxu0
    %v513 = vadd.f32 0.0, %v512
    %514 = vmatmul.f32.gmra.mxu0 %v451
    %v515 = vpop.f32.mrf.mxu0
    %v516 = vadd.f32 0.0, %v515
    %517 = vmatmul.f32.gmra.mxu0 %v454
    %v518 = vpop.f32.mrf.mxu0
    %v519 = vadd.f32 0.0, %v518
    %520 = vmatmul.f32.gmra.mxu0 %v457
    %v521 = vpop.f32.mrf.mxu0
    %v522 = vadd.f32 0.0, %v521
    %523 = vmatmul.f32.gmra.mxu0 %v460
    %v524 = vpop.f32.mrf.mxu0
    %v525 = vadd.f32 0.0, %v524
    %526 = vmatmul.f32.gmra.mxu0 %v463
    %v527 = vpop.f32.mrf.mxu0
    %v528 = vadd.f32 0.0, %v527
    %529 = vmatmul.f32.gmra.mxu0 %v466
    %v530 = vpop.f32.mrf.mxu0
    %v531 = vadd.f32 0.0, %v530
    %532 = vmatmul.f32.gmra.mxu0 %v469
    %v533 = vpop.f32.mrf.mxu0
    %v534 = vadd.f32 0.0, %v533
    %535 = vmatmul.f32.gmra.mxu0 %v472
    %v536 = vpop.f32.mrf.mxu0
    %v537 = vadd.f32 0.0, %v536
    %538 = vmatmul.f32.gmra.mxu0 %v475
    %v539 = vpop.f32.mrf.mxu0
    %v540 = vadd.f32 0.0, %v539
    %541 = vmatmul.f32.gmra.mxu0 %v478
    %v542 = vpop.f32.mrf.mxu0
    %v543 = vadd.f32 0.0, %v542
    %544 = vmatmul.f32.gmra.mxu0 %v481
    %v545 = vpop.f32.mrf.mxu0
    %v546 = vadd.f32 0.0, %v545
    %547 = vmatmul.f32.gmra.mxu0 %v484
    %v548 = vpop.f32.mrf.mxu0
    %v549 = vadd.f32 0.0, %v548
    %550 = vmatmul.f32.gmra.mxu0 %v487
    %v551 = vpop.f32.mrf.mxu0
    %v552 = vadd.f32 0.0, %v551
    %553 = vdwg.mxu0
    %vm554 = vcmask 523264
    %v556 = vsel %vm554, %v409, 0
    %v559 = vsel %vm554, %v410, 0
    %v562 = vsel %vm554, %v411, 0
    %v565 = vsel %vm554, %v412, 0
    %v568 = vsel %vm554, %v413, 0
    %v571 = vsel %vm554, %v414, 0
    %v574 = vsel %vm554, %v415, 0
    %v577 = vsel %vm554, %v416, 0
    %v580 = vsel %vm554, %v417, 0
    %v583 = vsel %vm554, %v418, 0
    %v586 = vsel %vm554, %v419, 0
    %v589 = vsel %vm554, %v420, 0
    %v592 = vsel %vm554, %v421, 0
    %v595 = vsel %vm554, %v422, 0
    %v598 = vsel %vm554, %v423, 0
    %v601 = vsel %vm554, %v424, 0
    %603 = vmatpush.msra.mxu0 0.0
    %604 = vmatpush.msra.mxu0 0.0
    %605 = vmatpush.msra.mxu0 0.0
    %606 = vmatpush.msra.mxu0 0.0
    %607 = vmatpush.msra.mxu0 0.0
    %608 = vmatpush.msra.mxu0 0.0
    %609 = vmatpush.msra.mxu0 0.0
    %610 = vmatpush.msra.mxu0 0.0
    %611 = vmatpush.msra.mxu0 %v408
    %612 = vmatpush.msra.mxu0 %v407
    %613 = vmatpush.msra.mxu0 %v406
    %614 = vmatpush.msra.mxu0 %v405
    %615 = vmatpush.msra.mxu0 %v404
    %616 = vmatpush.msra.mxu0 %v403
    %617 = vmatpush.msra.mxu0 %v402
    %618 = vmatpush.msra.mxu0 %v401
    %619 = vmatmul.f32.gmra.mxu0 %v556
    %v620 = vpop.f32.mrf.mxu0
    %v621 = vadd.f32 %v507, %v620
    %622 = vmatmul.f32.gmra.mxu0 %v559
    %v623 = vpop.f32.mrf.mxu0
    %v624 = vadd.f32 %v510, %v623
    %625 = vmatmul.f32.gmra.mxu0 %v562
    %v626 = vpop.f32.mrf.mxu0
    %v627 = vadd.f32 %v513, %v626
    %628 = vmatmul.f32.gmra.mxu0 %v565
    %v629 = vpop.f32.mrf.mxu0
    %v630 = vadd.f32 %v516, %v629
    %631 = vmatmul.f32.gmra.mxu0 %v568
    %v632 = vpop.f32.mrf.mxu0
    %v633 = vadd.f32 %v519, %v632
    %634 = vmatmul.f32.gmra.mxu0 %v571
    %v635 = vpop.f32.mrf.mxu0
    %v636 = vadd.f32 %v522, %v635
    %637 = vmatmul.f32.gmra.mxu0 %v574
    %v638 = vpop.f32.mrf.mxu0
    %v639 = vadd.f32 %v525, %v638
    %640 = vmatmul.f32.gmra.mxu0 %v577
    %v641 = vpop.f32.mrf.mxu0
    %v642 = vadd.f32 %v528, %v641
    %643 = vmatmul.f32.gmra.mxu0 %v580
    %v644 = vpop.f32.mrf.mxu0
    %v645 = vadd.f32 %v531, %v644
    %646 = vmatmul.f32.gmra.mxu0 %v583
    %v647 = vpop.f32.mrf.mxu0
    %v648 = vadd.f32 %v534, %v647
    %649 = vmatmul.f32.gmra.mxu0 %v586
    %v650 = vpop.f32.mrf.mxu0
    %v651 = vadd.f32 %v537, %v650
    %652 = vmatmul.f32.gmra.mxu0 %v589
    %v653 = vpop.f32.mrf.mxu0
    %v654 = vadd.f32 %v540, %v653
    %655 = vmatmul.f32.gmra.mxu0 %v592
    %v656 = vpop.f32.mrf.mxu0
    %v657 = vadd.f32 %v543, %v656
    %658 = vmatmul.f32.gmra.mxu0 %v595
    %v659 = vpop.f32.mrf.mxu0
    %v660 = vadd.f32 %v546, %v659
    %661 = vmatmul.f32.gmra.mxu0 %v598
    %v662 = vpop.f32.mrf.mxu0
    %v663 = vadd.f32 %v549, %v662
    %664 = vmatmul.f32.gmra.mxu0 %v601
    %v665 = vpop.f32.mrf.mxu0
    %v666 = vadd.f32 %v552, %v665
    %667 = vdwg.mxu0
    %v668 = vld [vmem:[%s10] sm:$0xff]
    %v669 = vld [vmem:[%s10 + $0x8] sm:$0xff]
    %v670 = vld [vmem:[%s10 + $0x10] sm:$0xff]
    %v671 = vld [vmem:[%s10 + $0x18] sm:$0xff]
    %v672 = vld [vmem:[%s10 + $0x20] sm:$0xff]
    %v673 = vld [vmem:[%s10 + $0x28] sm:$0xff]
    %v674 = vld [vmem:[%s10 + $0x30] sm:$0xff]
    %v675 = vld [vmem:[%s10 + $0x38] sm:$0xff]
    %v676 = vld [vmem:[%s10 + $0x40] sm:$0xff]
    %v677 = vld [vmem:[%s10 + $0x48] sm:$0xff]
    %v678 = vld [vmem:[%s10 + $0x50] sm:$0xff]
    %v679 = vld [vmem:[%s10 + $0x58] sm:$0xff]
    %v680 = vld [vmem:[%s10 + $0x60] sm:$0xff]
    %v681 = vld [vmem:[%s10 + $0x68] sm:$0xff]
    %v682 = vld [vmem:[%s10 + $0x70] sm:$0xff]
    %v683 = vld [vmem:[%s10 + $0x78] sm:$0xff]
    %685 = vset.pattern.permute.xlu0 0
    %686 = vperm.xlu0 %685, %v668
    %v687 = vpop.permute.xlu0 %686
    %690 = vset.pattern.permute.xlu0 0
    %691 = vperm.xlu0 %690, %v669
    %v692 = vpop.permute.xlu0 %691
    %695 = vset.pattern.permute.xlu0 0
    %696 = vperm.xlu0 %695, %v670
    %v697 = vpop.permute.xlu0 %696
    %700 = vset.pattern.permute.xlu0 0
    %701 = vperm.xlu0 %700, %v671
    %v702 = vpop.permute.xlu0 %701
    %705 = vset.pattern.permute.xlu0 0
    %706 = vperm.xlu0 %705, %v672
    %v707 = vpop.permute.xlu0 %706
    %710 = vset.pattern.permute.xlu0 0
    %711 = vperm.xlu0 %710, %v673
    %v712 = vpop.permute.xlu0 %711
    %715 = vset.pattern.permute.xlu0 0
    %716 = vperm.xlu0 %715, %v674
    %v717 = vpop.permute.xlu0 %716
    %720 = vset.pattern.permute.xlu0 0
    %721 = vperm.xlu0 %720, %v675
    %v722 = vpop.permute.xlu0 %721
    %725 = vset.pattern.permute.xlu0 0
    %726 = vperm.xlu0 %725, %v676
    %v727 = vpop.permute.xlu0 %726
    %730 = vset.pattern.permute.xlu0 0
    %731 = vperm.xlu0 %730, %v677
    %v732 = vpop.permute.xlu0 %731
    %735 = vset.pattern.permute.xlu0 0
    %736 = vperm.xlu0 %735, %v678
    %v737 = vpop.permute.xlu0 %736
    %740 = vset.pattern.permute.xlu0 0
    %741 = vperm.xlu0 %740, %v679
    %v742 = vpop.permute.xlu0 %741
    %745 = vset.pattern.permute.xlu0 0
    %746 = vperm.xlu0 %745, %v680
    %v747 = vpop.permute.xlu0 %746
    %750 = vset.pattern.permute.xlu0 0
    %751 = vperm.xlu0 %750, %v681
    %v752 = vpop.permute.xlu0 %751
    %755 = vset.pattern.permute.xlu0 0
    %756 = vperm.xlu0 %755, %v682
    %v757 = vpop.permute.xlu0 %756
    %760 = vset.pattern.permute.xlu0 0
    %761 = vperm.xlu0 %760, %v683
    %v762 = vpop.permute.xlu0 %761
    %v764 = vadd.f32 %v621, %v687
    %v765 = vadd.f32 %v624, %v692
    %v766 = vadd.f32 %v627, %v697
    %v767 = vadd.f32 %v630, %v702
    %v768 = vadd.f32 %v633, %v707
    %v769 = vadd.f32 %v636, %v712
    %v770 = vadd.f32 %v639, %v717
    %v771 = vadd.f32 %v642, %v722
    %v772 = vadd.f32 %v645, %v727
    %v773 = vadd.f32 %v648, %v732
    %v774 = vadd.f32 %v651, %v737
    %v775 = vadd.f32 %v654, %v742
    %v776 = vadd.f32 %v657, %v747
    %v777 = vadd.f32 %v660, %v752
    %v778 = vadd.f32 %v663, %v757
    %v779 = vadd.f32 %v666, %v762
    %v780 = vmax.f32 %v764, 0.0
    %v781 = vmax.f32 %v765, 0.0
    %v782 = vmax.f32 %v766, 0.0
    %v783 = vmax.f32 %v767, 0.0
    %v784 = vmax.f32 %v768, 0.0
    %v785 = vmax.f32 %v769, 0.0
    %v786 = vmax.f32 %v770, 0.0
    %v787 = vmax.f32 %v771, 0.0
    %v788 = vmax.f32 %v772, 0.0
    %v789 = vmax.f32 %v773, 0.0
    %v790 = vmax.f32 %v774, 0.0
    %v791 = vmax.f32 %v775, 0.0
    %v792 = vmax.f32 %v776, 0.0
    %v793 = vmax.f32 %v777, 0.0
    %v794 = vmax.f32 %v778, 0.0
    %v795 = vmax.f32 %v779, 0.0
    %v796 = vld [vmem:[%s11] sm:$0xff]
    %v797 = vld [vmem:[%s12] sm:$0xff]
    %799 = vset.pattern.permute.xlu0 0
    %800 = vperm.xlu0 %799, %v797
    %v801 = vpop.permute.xlu0 %800
    %803 = vmatpush.msra.mxu0 %v795
    %804 = vmatpush.msra.mxu0 %v794
    %805 = vmatpush.msra.mxu0 %v793
    %806 = vmatpush.msra.mxu0 %v792
    %807 = vmatpush.msra.mxu0 %v791
    %808 = vmatpush.msra.mxu0 %v790
    %809 = vmatpush.msra.mxu0 %v789
    %810 = vmatpush.msra.mxu0 %v788
    %811 = vmatpush.msra.mxu0 %v787
    %812 = vmatpush.msra.mxu0 %v786
    %813 = vmatpush.msra.mxu0 %v785
    %814 = vmatpush.msra.mxu0 %v784
    %815 = vmatpush.msra.mxu0 %v783
    %816 = vmatpush.msra.mxu0 %v782
    %817 = vmatpush.msra.mxu0 %v781
    %818 = vmatpush.msra.mxu0 %v780
    %819 = vmatmul.f32.gmra.mxu0 %v796
    %v820 = vpop.f32.mrf.mxu0
    %v821 = vadd.f32 %v801, %v820
    %822 = vdwg.mxu0
    %823 = vst.msk [vmem:[#allocation3] sm:$0xff] %vm49, %v821
    // Predicated region
    $region61: #{tpu_custom_call.1} parent=1 // pred_check
      _
    $region62: #{tpu_custom_call.1} parent=1 // pred_check_branch
      %825 = sbr.rel (0) target = $region64
    $region63: #{tpu_custom_call.1} parent=1 // pred_region
      _
    $region64: #{tpu_custom_call.1} parent=1 // pred_fallthru
      _
    // Predicated region
    $region65: #{tpu_custom_call.1} parent=1 // pred_check
      _
    $region66: #{tpu_custom_call.1} parent=1 // pred_check_branch
      %827 = sbr.rel (0) target = $region68
    $region67: #{tpu_custom_call.1} parent=1 // pred_region
      %829 = vsyncadd [#allocation4], 0
      %s831 = sshll.u32 [#allocation3], 4
      %s832 = int_to_ptr.vmem [resolvable:$true] %s831
      %s833 = sshll.u32 %s14, 4
      %s834 = int_to_ptr.hbm [resolvable:$true] %s833
      %836 = dma.vmem_to_hbm [thread:$0]  %s832, 128, %s834, [#allocation4]
    $region68: #{tpu_custom_call.1} parent=1 // pred_fallthru
      _
    // Predicated region
    $region69: #{tpu_custom_call.1} parent=1 // pred_check
      _
    $region70: #{tpu_custom_call.1} parent=1 // pred_check_branch
      %838 = sbr.rel (0) target = $region72
    $region71: #{tpu_custom_call.1} parent=1 // pred_region
      _
    $region72: #{tpu_custom_call.1} parent=1 // pred_fallthru
      _
    // Predicated region
    $region73: #{tpu_custom_call.1} parent=1 // pred_check
      _
    $region74: #{tpu_custom_call.1} parent=1 // pred_check_branch
      %840 = sbr.rel (0) target = $region76
    $region75: #{tpu_custom_call.1} parent=1 // pred_region
      %842 = dma.done [#allocation4], 128
    $region76: #{tpu_custom_call.1} parent=1 // pred_fallthru
      _
    %843 = vsyncpa [#allocation4], 1

// kernel: tpu_custom_call.1
$region0: #{tpu_custom_call.1}
  #allocation0 [shape = 'u32[]', space=smem, size = 0x4, offset = 0x4, fixed_abs, tag = 'smem constant byte address 0x4 - core index']
  #allocation1 [shape = 'u32[72,128]{1,0:T(1,128)}', space=vmem, size = 0x9000, scoped, tag = 'internal scratch']
  #allocation2 [shape = 'f32[8,8]{1,0:T(8,128)}', space=vmem, size = 0x1000, scoped, tag = 'scratch operand']
  %s0 = inlined_call_operand.vmem [shape: f32[16,8], index: 0, kind: input, shape index: {}]
  %s1 = inlined_call_operand.vmem [shape: f32[1,8], index: 1, kind: input, shape index: {}]
  %s2 = inlined_call_operand.vmem [shape: f32[8,16], index: 2, kind: input, shape index: {}]
  %s3 = inlined_call_operand.vmem [shape: f32[8,16], index: 3, kind: input, shape index: {}]
  %s4 = inlined_call_operand.vmem [shape: f32[16,8], index: 4, kind: input, shape index: {}]
  %s5 = inlined_call_operand.vmem [shape: f32[16,8], index: 5, kind: input, shape index: {}]
  %s6 = inlined_call_operand.vmem [shape: f32[64,16], index: 6, kind: input, shape index: {}]
  %s7 = inlined_call_operand.vmem [shape: f32[64,1], index: 7, kind: input, shape index: {}]
  %s8 = inlined_call_operand.vmem [shape: f32[128,64], index: 8, kind: input, shape index: {}]
  %s9 = inlined_call_operand.vmem [shape: f32[128,16], index: 9, kind: input, shape index: {}]
  %s10 = inlined_call_operand.vmem [shape: f32[128,1], index: 10, kind: input, shape index: {}]
  %s11 = inlined_call_operand.vmem [shape: f32[8,128], index: 11, kind: input, shape index: {}]
  %s12 = inlined_call_operand.vmem [shape: f32[8,1], index: 12, kind: input, shape index: {}]
  %s13 = inlined_call_operand.vmem [shape: f32[16,8], index: 13, kind: output, shape index: {0}]
  %s14 = inlined_call_operand.hbm [shape: f32[8,8], index: 14, kind: output, shape index: {1}]
  %15 = xla_tuple %s13, %s14
  %s16 = sld [smem:[#allocation0]]
  $region77: #{tpu_custom_call.1} parent=0
    _
  %s18 = ssub.s32 1, %s16
  %s19 = scalar_select 0, %s18, %s16
  $region1: #{tpu_custom_call.1} parent=0
    #allocation3 [shape = 'u8[4096]{0}', space=vmem, size = 0x1000, scoped, tag = 'output window, operand 1, single buffered']
    #allocation4 [shape = 's32[1]{0}', space=sflag, size = 0x4, scoped, tag = 'scoped memory for tpu_custom_call.1']
    %20 = vsyncpa [#allocation4], 0
    // Predicated region
    $region2: #{tpu_custom_call.1} parent=1 // pred_check
      _
    $region3: #{tpu_custom_call.1} parent=1 // pred_check_branch
      %22 = sbr.rel (0) target = $region5
    $region4: #{tpu_custom_call.1} parent=1 // pred_region
      _
    $region5: #{tpu_custom_call.1} parent=1 // pred_fallthru
      _
    // Predicated region
    $region6: #{tpu_custom_call.1} parent=1 // pred_check
      _
    $region7: #{tpu_custom_call.1} parent=1 // pred_check_branch
      %24 = sbr.rel (0) target = $region9
    $region8: #{tpu_custom_call.1} parent=1 // pred_region
      _
    $region9: #{tpu_custom_call.1} parent=1 // pred_fallthru
      _
    // Predicated region
    $region10: #{tpu_custom_call.1} parent=1 // pred_check
      _
    $region11: #{tpu_custom_call.1} parent=1 // pred_check_branch
      %26 = sbr.rel (0) target = $region13
    $region12: #{tpu_custom_call.1} parent=1 // pred_region
      _
    $region13: #{tpu_custom_call.1} parent=1 // pred_fallthru
      _
    // Predicated region
    $region14: #{tpu_custom_call.1} parent=1 // pred_check
      _
    $region15: #{tpu_custom_call.1} parent=1 // pred_check_branch
      %28 = sbr.rel (0) target = $region17
    $region16: #{tpu_custom_call.1} parent=1 // pred_region
      _
    $region17: #{tpu_custom_call.1} parent=1 // pred_fallthru
      _
    // Predicated region
    $region18: #{tpu_custom_call.1} parent=1 // pred_check
      _
    $region19: #{tpu_custom_call.1} parent=1 // pred_check_branch
      %30 = sbr.rel (0) target = $region21
    $region20: #{tpu_custom_call.1} parent=1 // pred_region
      _
    $region21: #{tpu_custom_call.1} parent=1 // pred_fallthru
      _
    // Predicated region
    $region22: #{tpu_custom_call.1} parent=1 // pred_check
      _
    $region23: #{tpu_custom_call.1} parent=1 // pred_check_branch
      %32 = sbr.rel (0) target = $region25
    $region24: #{tpu_custom_call.1} parent=1 // pred_region
      _
    $region25: #{tpu_custom_call.1} parent=1 // pred_fallthru
      _
    // Predicated region
    $region26: #{tpu_custom_call.1} parent=1 // pred_check
      _
    $region27: #{tpu_custom_call.1} parent=1 // pred_check_branch
      %34 = sbr.rel (0) target = $region29
    $region28: #{tpu_custom_call.1} parent=1 // pred_region
      _
    $region29: #{tpu_custom_call.1} parent=1 // pred_fallthru
      _
    // Predicated region
    $region30: #{tpu_custom_call.1} parent=1 // pred_check
      _
    $region31: #{tpu_custom_call.1} parent=1 // pred_check_branch
      %36 = sbr.rel (0) target = $region33
    $region32: #{tpu_custom_call.1} parent=1 // pred_region
      _
    $region33: #{tpu_custom_call.1} parent=1 // pred_fallthru
      _
    // Predicated region
    $region34: #{tpu_custom_call.1} parent=1 // pred_check
      _
    $region35: #{tpu_custom_call.1} parent=1 // pred_check_branch
      %38 = sbr.rel (0) target = $region37
    $region36: #{tpu_custom_call.1} parent=1 // pred_region
      _
    $region37: #{tpu_custom_call.1} parent=1 // pred_fallthru
      _
    // Predicated region
    $region38: #{tpu_custom_call.1} parent=1 // pred_check
      _
    $region39: #{tpu_custom_call.1} parent=1 // pred_check_branch
      %40 = sbr.rel (0) target = $region41
    $region40: #{tpu_custom_call.1} parent=1 // pred_region
      _
    $region41: #{tpu_custom_call.1} parent=1 // pred_fallthru
      _
    // Predicated region
    $region42: #{tpu_custom_call.1} parent=1 // pred_check
      _
    $region43: #{tpu_custom_call.1} parent=1 // pred_check_branch
      %42 = sbr.rel (0) target = $region45
    $region44: #{tpu_custom_call.1} parent=1 // pred_region
      _
    $region45: #{tpu_custom_call.1} parent=1 // pred_fallthru
      _
    // Predicated region
    $region46: #{tpu_custom_call.1} parent=1 // pred_check
      _
    $region47: #{tpu_custom_call.1} parent=1 // pred_check_branch
      %44 = sbr.rel (0) target = $region49
    $region48: #{tpu_custom_call.1} parent=1 // pred_region
      _
    $region49: #{tpu_custom_call.1} parent=1 // pred_fallthru
      _
    // Predicated region
    $region50: #{tpu_custom_call.1} parent=1 // pred_check
      _
    $region51: #{tpu_custom_call.1} parent=1 // pred_check_branch
      %46 = sbr.rel (0) target = $region53
    $region52: #{tpu_custom_call.1} parent=1 // pred_region
      _
    $region53: #{tpu_custom_call.1} parent=1 // pred_fallthru
      _
    %v47 = vld [vmem:[%s0] sm:$0xff]
    %v48 = vld [vmem:[%s0 + $0x8] sm:$0xff]
    %vm49 = vcmask 64512
    %v50 = vsel %vm49, %v47, 0.0
    %v51 = vsel %vm49, %v48, 0.0
    %v52 = vadd.f32 %v50, %v51
    %v53 = vrot.slane %v52, 4
    %v54 = vadd.f32 %v52, %v53
    %v55 = vrot.slane %v54, 2
    %v56 = vadd.f32 %v54, %v55
    %v57 = vrot.slane %v56, 1
    %v58 = vadd.f32 %v56, %v57
    %v59 = vld [vmem:[%s2] sm:$0xff]
    %vm60 = vcmask 130048
    %v62 = vsel %vm60, %v59, 0
    %64 = vmatpush.msra.mxu0 0.0
    %65 = vmatpush.msra.mxu0 0.0
    %66 = vmatpush.msra.mxu0 0.0
    %67 = vmatpush.msra.mxu0 0.0
    %68 = vmatpush.msra.mxu0 0.0
    %69 = vmatpush.msra.mxu0 0.0
    %70 = vmatpush.msra.mxu0 0.0
    %71 = vmatpush.msra.mxu0 0.0
    %72 = vmatpush.msra.mxu0 0.0
    %73 = vmatpush.msra.mxu0 0.0
    %74 = vmatpush.msra.mxu0 0.0
    %75 = vmatpush.msra.mxu0 0.0
    %76 = vmatpush.msra.mxu0 0.0
    %77 = vmatpush.msra.mxu0 0.0
    %78 = vmatpush.msra.mxu0 %v48
    %79 = vmatpush.msra.mxu0 %v47
    %80 = vmatmul.f32.gmra.mxu0 %v62
    %v81 = vpop.f32.mrf.mxu0
    %v82 = vadd.f32 0.0, %v81
    %83 = vdwg.mxu0
    %v84 = vld [vmem:[%s3] sm:$0xff]
    %v86 = vsel %vm60, %v84, 0
    %88 = vmatpush.msra.mxu0 0.0
    %89 = vmatpush.msra.mxu0 0.0
    %90 = vmatpush.msra.mxu0 0.0
    %91 = vmatpush.msra.mxu0 0.0
    %92 = vmatpush.msra.mxu0 0.0
    %93 = vmatpush.msra.mxu0 0.0
    %94 = vmatpush.msra.mxu0 0.0
    %95 = vmatpush.msra.mxu0 0.0
    %96 = vmatpush.msra.mxu0 0.0
    %97 = vmatpush.msra.mxu0 0.0
    %98 = vmatpush.msra.mxu0 0.0
    %99 = vmatpush.msra.mxu0 0.0
    %100 = vmatpush.msra.mxu0 0.0
    %101 = vmatpush.msra.mxu0 0.0
    %102 = vmatpush.msra.mxu0 %v48
    %103 = vmatpush.msra.mxu0 %v47
    %104 = vmatmul.f32.gmra.mxu0 %v86
    %v105 = vpop.f32.mrf.mxu0
    %v106 = vadd.f32 0.0, %v105
    %107 = vdwg.mxu0
    %v108 = vmul.f32 %v82, %v82
    %v109 = vmul.f32 %v106, %v106
    %v110 = vadd.f32 %v108, %v109
    %v111 = vrsqrt.pop %v110
    %v112 = vmul.f32 %v111, %v110
    %v113 = vmul.f32 %v112, %v111
    %v114 = vmul.f32 0.5, %v113
    %v115 = vsub.f32 1.5, %v114
    %v116 = vmul.f32 %v111, %v115
    %v117 = vmul.f32 %v110, %v116
    %vm118 = vcmp.eq.f32.partialorder %v110, inf
    %v119 = vsel %vm118, %v110, %v117
    %vm120 = vcmp.eq.f32.partialorder %v110, 0.0
    %v121 = vand.u32 %v110, 2147483648
    %v122 = vsel %vm120, %v121, %v119
    %v123 = vsel %vm49, %v122, 0.0
    %v124 = vrot.slane %v123, 4
    %v125 = vadd.f32 %v123, %v124
    %v126 = vrot.slane %v125, 2
    %v127 = vadd.f32 %v125, %v126
    %v128 = vrot.slane %v127, 1
    %v129 = vadd.f32 %v127, %v128
    %130 = vst.msk [vmem:[#allocation2] sm:$0xff] %vm49, %v122
    loop: start=0, step=1, limit=8
    $region54: #{tpu_custom_call.1} parent=1 // loop_pre_header
      _
    $region55: #{tpu_custom_call.1} parent=1 // loop_header
      %s132 = sphi 0, %s136
      %p133 = scmp.ge.s32.totalorder %s132, 8
      %v137 = vphi 0.0, %v143
    $region56: #{tpu_custom_call.1} parent=1 // loop_header_branch
      %135 = sbr.rel (%p133) target = $region60
    $region57: #{tpu_custom_call.1} parent=1 // loop_body
      %s138 = scalar_lea.vmem [#allocation2], %s132
      %v139 = vld [vmem:[%s138] sm:$0x1]
      %v140 = vperm.slane %v139, 0
      %vm141 = vcmp.ge.f32.partialorder %v140, %v122
      %v142 = vsel %vm141, %v140, 0.0
      %v143 = vadd.f32 %v137, %v142
    $region58: #{tpu_custom_call.1} parent=1 // loop_footer
      %s136 = sadd.s32 1, %s132
    $region59: #{tpu_custom_call.1} parent=1 // loop_footer_branch
      %131 = sbr.rel target = $region55
    $region60: #{tpu_custom_call.1} parent=1 // loop_exit
      _
    %v144 = vmax.f32 %v129, 1e-08
    %v145 = vrcp.pop %v144
    %v146 = vmul.f32 %v144, %v145
    %v147 = vsub.f32 2.0, %v146
    %v148 = vmul.f32 %v145, %v147
    %v149 = vmul.f32 %v129, 9.0
    %v150 = vsel %vm49, %v137, 0.0
    %v151 = vrot.slane %v150, 4
    %v152 = vadd.f32 %v150, %v151
    %v153 = vrot.slane %v152, 2
    %v154 = vadd.f32 %v152, %v153
    %v155 = vrot.slane %v154, 1
    %v156 = vadd.f32 %v154, %v155
    %v157 = vsub.f32 %v149, %v156
    %v158 = vmul.f32 %v157, %v148
    %v159 = vmul.f32 %v158, 0.125
    %v160 = vmul.f32 %v159, 2.0
    %v161 = vsub.f32 1.0, %v160
    %v162 = vld [vmem:[%s1] sm:$0x1]
    %v163 = vxor.u32 %v162, 2147483648
    %v164 = vmul.f32 %v163, 1.442695
    %v165 = vpow.pop %v164
    %v166 = vadd.f32 %v165, 1.0
    %v167 = vrcp.pop %v166
    %v168 = vmul.f32 %v166, %v167
    %v169 = vsub.f32 1.0, %v168
    %v170 = vmul.f32 %v167, %v169
    %v171 = vadd.f32 %v167, %v170
    %vm172 = vweird.f32 %v166
    %vm173 = vweird.f32 %v167
    %vm174 = vmor %vm172, %vm173
    %v175 = vsel %vm174, %v167, %v171
    %v176 = vand.u32 2147483647, %v166
    %vm177 = vcmp.eq.f32.partialorder %v176, 8.507059e+37
    %v178 = vand.u32 %v166, 2147483648
    %v179 = vor.u32 1.1754944e-38, %v178
    %v180 = vsel %vm177, %v179, %v175
    %v181 = vmul.f32 1.0, %v180
    %v182 = vsub.f32 1.0, %v181
    %v183 = vmul.f32 %v181, %v161
    %v184 = vadd.f32 %v182, %v183
    %v185 = vmul.f32 %v184, %v129
    %v187 = vperm.slane %v185, 0
    %v189 = vsub.f32 %v187, %v137
    %v190 = vxor.u32 %v189, 2147483648
    %v191 = vmul.f32 %v190, 1.442695
    %v192 = vpow.pop %v191
    %v193 = vadd.f32 %v192, 1.0
    %v194 = vrcp.pop %v193
    %v195 = vmul.f32 %v193, %v194
    %v196 = vsub.f32 1.0, %v195
    %v197 = vmul.f32 %v194, %v196
    %v198 = vadd.f32 %v194, %v197
    %vm199 = vweird.f32 %v193
    %vm200 = vweird.f32 %v194
    %vm201 = vmor %vm199, %vm200
    %v202 = vsel %vm201, %v194, %v198
    %v203 = vand.u32 2147483647, %v193
    %vm204 = vcmp.eq.f32.partialorder %v203, 8.507059e+37
    %v205 = vand.u32 %v193, 2147483648
    %v206 = vor.u32 1.1754944e-38, %v205
    %v207 = vsel %vm204, %v206, %v202
    %v208 = vmul.f32 1.0, %v207
    %v209 = vmul.f32 %v82, %v208
    %v210 = vmul.f32 %v106, %v208
    %v211 = vld [vmem:[%s4] sm:$0xff]
    %v212 = vld [vmem:[%s4 + $0x8] sm:$0xff]
    %v213 = vld [vmem:[%s5] sm:$0xff]
    %v214 = vld [vmem:[%s5 + $0x8] sm:$0xff]
    %v216 = vsel %vm49, %v213, 0
    %v219 = vsel %vm49, %v214, 0
    %221 = vmatpush.msra.mxu0 0.0
    %222 = vmatpush.msra.mxu0 0.0
    %223 = vmatpush.msra.mxu0 0.0
    %224 = vmatpush.msra.mxu0 0.0
    %225 = vmatpush.msra.mxu0 0.0
    %226 = vmatpush.msra.mxu0 0.0
    %227 = vmatpush.msra.mxu0 0.0
    %228 = vmatpush.msra.mxu0 0.0
    %229 = vmatpush.msra.mxu0 0.0
    %230 = vmatpush.msra.mxu0 0.0
    %231 = vmatpush.msra.mxu0 0.0
    %232 = vmatpush.msra.mxu0 0.0
    %233 = vmatpush.msra.mxu0 0.0
    %234 = vmatpush.msra.mxu0 0.0
    %235 = vmatpush.msra.mxu0 0.0
    %236 = vmatpush.msra.mxu0 %v210
    %237 = vmatmul.f32.gmra.mxu0 %v216
    %v238 = vpop.f32.mrf.mxu0
    %v239 = vadd.f32 0.0, %v238
    %240 = vmatmul.f32.gmra.mxu0 %v219
    %v241 = vpop.f32.mrf.mxu0
    %v242 = vadd.f32 0.0, %v241
    %243 = vdwg.mxu0
    %v245 = vsel %vm49, %v211, 0
    %v248 = vsel %vm49, %v212, 0
    %250 = vmatpush.msra.mxu0 0.0
    %251 = vmatpush.msra.mxu0 0.0
    %252 = vmatpush.msra.mxu0 0.0
    %253 = vmatpush.msra.mxu0 0.0
    %254 = vmatpush.msra.mxu0 0.0
    %255 = vmatpush.msra.mxu0 0.0
    %256 = vmatpush.msra.mxu0 0.0
    %257 = vmatpush.msra.mxu0 0.0
    %258 = vmatpush.msra.mxu0 0.0
    %259 = vmatpush.msra.mxu0 0.0
    %260 = vmatpush.msra.mxu0 0.0
    %261 = vmatpush.msra.mxu0 0.0
    %262 = vmatpush.msra.mxu0 0.0
    %263 = vmatpush.msra.mxu0 0.0
    %264 = vmatpush.msra.mxu0 0.0
    %265 = vmatpush.msra.mxu0 %v209
    %266 = vmatmul.f32.gmra.mxu0 %v245
    %v267 = vpop.f32.mrf.mxu0
    %v268 = vadd.f32 %v239, %v267
    %269 = vmatmul.f32.gmra.mxu0 %v248
    %v270 = vpop.f32.mrf.mxu0
    %v271 = vadd.f32 %v242, %v270
    %272 = vdwg.mxu0
    %v273 = vmul.f32 %v58, 0.0625
    %v274 = vadd.f32 %v268, %v273
    %v275 = vadd.f32 %v271, %v273
    %v276 = vsub.f32 %v47, %v274
    %v277 = vsub.f32 %v48, %v275
    %278 = vst.msk [vmem:[%s13] sm:$0xff] %vm49, %v276
    %279 = vst.msk [vmem:[%s13 + $0x8] sm:$0xff] %vm49, %v277
    %v280 = vld [vmem:[%s6] sm:$0xff]
    %v281 = vld [vmem:[%s6 + $0x8] sm:$0xff]
    %v282 = vld [vmem:[%s6 + $0x10] sm:$0xff]
    %v283 = vld [vmem:[%s6 + $0x18] sm:$0xff]
    %v284 = vld [vmem:[%s6 + $0x20] sm:$0xff]
    %v285 = vld [vmem:[%s6 + $0x28] sm:$0xff]
    %v286 = vld [vmem:[%s6 + $0x30] sm:$0xff]
    %v287 = vld [vmem:[%s6 + $0x38] sm:$0xff]
    %v288 = vld [vmem:[%s7] sm:$0xff]
    %v289 = vld [vmem:[%s7 + $0x8] sm:$0xff]
    %v290 = vld [vmem:[%s7 + $0x10] sm:$0xff]
    %v291 = vld [vmem:[%s7 + $0x18] sm:$0xff]
    %v292 = vld [vmem:[%s7 + $0x20] sm:$0xff]
    %v293 = vld [vmem:[%s7 + $0x28] sm:$0xff]
    %v294 = vld [vmem:[%s7 + $0x30] sm:$0xff]
    %v295 = vld [vmem:[%s7 + $0x38] sm:$0xff]
    %297 = vset.pattern.permute.xlu0 0
    %298 = vperm.xlu0 %297, %v288
    %v299 = vpop.permute.xlu0 %298
    %302 = vset.pattern.permute.xlu0 0
    %303 = vperm.xlu0 %302, %v289
    %v304 = vpop.permute.xlu0 %303
    %307 = vset.pattern.permute.xlu0 0
    %308 = vperm.xlu0 %307, %v290
    %v309 = vpop.permute.xlu0 %308
    %312 = vset.pattern.permute.xlu0 0
    %313 = vperm.xlu0 %312, %v291
    %v314 = vpop.permute.xlu0 %313
    %317 = vset.pattern.permute.xlu0 0
    %318 = vperm.xlu0 %317, %v292
    %v319 = vpop.permute.xlu0 %318
    %322 = vset.pattern.permute.xlu0 0
    %323 = vperm.xlu0 %322, %v293
    %v324 = vpop.permute.xlu0 %323
    %327 = vset.pattern.permute.xlu0 0
    %328 = vperm.xlu0 %327, %v294
    %v329 = vpop.permute.xlu0 %328
    %332 = vset.pattern.permute.xlu0 0
    %333 = vperm.xlu0 %332, %v295
    %v334 = vpop.permute.xlu0 %333
    %v337 = vsel %vm60, %v280, 0
    %v340 = vsel %vm60, %v281, 0
    %v343 = vsel %vm60, %v282, 0
    %v346 = vsel %vm60, %v283, 0
    %v349 = vsel %vm60, %v284, 0
    %v352 = vsel %vm60, %v285, 0
    %v355 = vsel %vm60, %v286, 0
    %v358 = vsel %vm60, %v287, 0
    %360 = vmatpush.msra.mxu0 0.0
    %361 = vmatpush.msra.mxu0 0.0
    %362 = vmatpush.msra.mxu0 0.0
    %363 = vmatpush.msra.mxu0 0.0
    %364 = vmatpush.msra.mxu0 0.0
    %365 = vmatpush.msra.mxu0 0.0
    %366 = vmatpush.msra.mxu0 0.0
    %367 = vmatpush.msra.mxu0 0.0
    %368 = vmatpush.msra.mxu0 0.0
    %369 = vmatpush.msra.mxu0 0.0
    %370 = vmatpush.msra.mxu0 0.0
    %371 = vmatpush.msra.mxu0 0.0
    %372 = vmatpush.msra.mxu0 0.0
    %373 = vmatpush.msra.mxu0 0.0
    %374 = vmatpush.msra.mxu0 %v275
    %375 = vmatpush.msra.mxu0 %v274
    %376 = vmatmul.f32.gmra.mxu0 %v337
    %v377 = vpop.f32.mrf.mxu0
    %v378 = vadd.f32 %v299, %v377
    %379 = vmatmul.f32.gmra.mxu0 %v340
    %v380 = vpop.f32.mrf.mxu0
    %v381 = vadd.f32 %v304, %v380
    %382 = vmatmul.f32.gmra.mxu0 %v343
    %v383 = vpop.f32.mrf.mxu0
    %v384 = vadd.f32 %v309, %v383
    %385 = vmatmul.f32.gmra.mxu0 %v346
    %v386 = vpop.f32.mrf.mxu0
    %v387 = vadd.f32 %v314, %v386
    %388 = vmatmul.f32.gmra.mxu0 %v349
    %v389 = vpop.f32.mrf.mxu0
    %v390 = vadd.f32 %v319, %v389
    %391 = vmatmul.f32.gmra.mxu0 %v352
    %v392 = vpop.f32.mrf.mxu0
    %v393 = vadd.f32 %v324, %v392
    %394 = vmatmul.f32.gmra.mxu0 %v355
    %v395 = vpop.f32.mrf.mxu0
    %v396 = vadd.f32 %v329, %v395
    %397 = vmatmul.f32.gmra.mxu0 %v358
    %v398 = vpop.f32.mrf.mxu0
    %v399 = vadd.f32 %v334, %v398
    %400 = vdwg.mxu0
    %v401 = vmax.f32 %v378, 0.0
    %v402 = vmax.f32 %v381, 0.0
    %v403 = vmax.f32 %v384, 0.0
    %v404 = vmax.f32 %v387, 0.0
    %v405 = vmax.f32 %v390, 0.0
    %v406 = vmax.f32 %v393, 0.0
    %v407 = vmax.f32 %v396, 0.0
    %v408 = vmax.f32 %v399, 0.0
    %v409 = vld [vmem:[%s8] sm:$0xff]
    %v410 = vld [vmem:[%s8 + $0x8] sm:$0xff]
    %v411 = vld [vmem:[%s8 + $0x10] sm:$0xff]
    %v412 = vld [vmem:[%s8 + $0x18] sm:$0xff]
    %v413 = vld [vmem:[%s8 + $0x20] sm:$0xff]
    %v414 = vld [vmem:[%s8 + $0x28] sm:$0xff]
    %v415 = vld [vmem:[%s8 + $0x30] sm:$0xff]
    %v416 = vld [vmem:[%s8 + $0x38] sm:$0xff]
    %v417 = vld [vmem:[%s8 + $0x40] sm:$0xff]
    %v418 = vld [vmem:[%s8 + $0x48] sm:$0xff]
    %v419 = vld [vmem:[%s8 + $0x50] sm:$0xff]
    %v420 = vld [vmem:[%s8 + $0x58] sm:$0xff]
    %v421 = vld [vmem:[%s8 + $0x60] sm:$0xff]
    %v422 = vld [vmem:[%s8 + $0x68] sm:$0xff]
    %v423 = vld [vmem:[%s8 + $0x70] sm:$0xff]
    %v424 = vld [vmem:[%s8 + $0x78] sm:$0xff]
    %v425 = vld [vmem:[%s9] sm:$0xff]
    %v426 = vld [vmem:[%s9 + $0x8] sm:$0xff]
    %v427 = vld [vmem:[%s9 + $0x10] sm:$0xff]
    %v428 = vld [vmem:[%s9 + $0x18] sm:$0xff]
    %v429 = vld [vmem:[%s9 + $0x20] sm:$0xff]
    %v430 = vld [vmem:[%s9 + $0x28] sm:$0xff]
    %v431 = vld [vmem:[%s9 + $0x30] sm:$0xff]
    %v432 = vld [vmem:[%s9 + $0x38] sm:$0xff]
    %v433 = vld [vmem:[%s9 + $0x40] sm:$0xff]
    %v434 = vld [vmem:[%s9 + $0x48] sm:$0xff]
    %v435 = vld [vmem:[%s9 + $0x50] sm:$0xff]
    %v436 = vld [vmem:[%s9 + $0x58] sm:$0xff]
    %v437 = vld [vmem:[%s9 + $0x60] sm:$0xff]
    %v438 = vld [vmem:[%s9 + $0x68] sm:$0xff]
    %v439 = vld [vmem:[%s9 + $0x70] sm:$0xff]
    %v440 = vld [vmem:[%s9 + $0x78] sm:$0xff]
    %v442 = vsel %vm60, %v425, 0
    %v445 = vsel %vm60, %v426, 0
    %v448 = vsel %vm60, %v427, 0
    %v451 = vsel %vm60, %v428, 0
    %v454 = vsel %vm60, %v429, 0
    %v457 = vsel %vm60, %v430, 0
    %v460 = vsel %vm60, %v431, 0
    %v463 = vsel %vm60, %v432, 0
    %v466 = vsel %vm60, %v433, 0
    %v469 = vsel %vm60, %v434, 0
    %v472 = vsel %vm60, %v435, 0
    %v475 = vsel %vm60, %v436, 0
    %v478 = vsel %vm60, %v437, 0
    %v481 = vsel %vm60, %v438, 0
    %v484 = vsel %vm60, %v439, 0
    %v487 = vsel %vm60, %v440, 0
    %489 = vmatpush.msra.mxu0 0.0
    %490 = vmatpush.msra.mxu0 0.0
    %491 = vmatpush.msra.mxu0 0.0
    %492 = vmatpush.msra.mxu0 0.0
    %493 = vmatpush.msra.mxu0 0.0
    %494 = vmatpush.msra.mxu0 0.0
    %495 = vmatpush.msra.mxu0 0.0
    %496 = vmatpush.msra.mxu0 0.0
    %497 = vmatpush.msra.mxu0 0.0
    %498 = vmatpush.msra.mxu0 0.0
    %499 = vmatpush.msra.mxu0 0.0
    %500 = vmatpush.msra.mxu0 0.0
    %501 = vmatpush.msra.mxu0 0.0
    %502 = vmatpush.msra.mxu0 0.0
    %503 = vmatpush.msra.mxu0 %v48
    %504 = vmatpush.msra.mxu0 %v47
    %505 = vmatmul.f32.gmra.mxu0 %v442
    %v506 = vpop.f32.mrf.mxu0
    %v507 = vadd.f32 0.0, %v506
    %508 = vmatmul.f32.gmra.mxu0 %v445
    %v509 = vpop.f32.mrf.mxu0
    %v510 = vadd.f32 0.0, %v509
    %511 = vmatmul.f32.gmra.mxu0 %v448
    %v512 = vpop.f32.mrf.mxu0
    %v513 = vadd.f32 0.0, %v512
    %514 = vmatmul.f32.gmra.mxu0 %v451
    %v515 = vpop.f32.mrf.mxu0
    %v516 = vadd.f32 0.0, %v515
    %517 = vmatmul.f32.gmra.mxu0 %v454
    %v518 = vpop.f32.mrf.mxu0
    %v519 = vadd.f32 0.0, %v518
    %520 = vmatmul.f32.gmra.mxu0 %v457
    %v521 = vpop.f32.mrf.mxu0
    %v522 = vadd.f32 0.0, %v521
    %523 = vmatmul.f32.gmra.mxu0 %v460
    %v524 = vpop.f32.mrf.mxu0
    %v525 = vadd.f32 0.0, %v524
    %526 = vmatmul.f32.gmra.mxu0 %v463
    %v527 = vpop.f32.mrf.mxu0
    %v528 = vadd.f32 0.0, %v527
    %529 = vmatmul.f32.gmra.mxu0 %v466
    %v530 = vpop.f32.mrf.mxu0
    %v531 = vadd.f32 0.0, %v530
    %532 = vmatmul.f32.gmra.mxu0 %v469
    %v533 = vpop.f32.mrf.mxu0
    %v534 = vadd.f32 0.0, %v533
    %535 = vmatmul.f32.gmra.mxu0 %v472
    %v536 = vpop.f32.mrf.mxu0
    %v537 = vadd.f32 0.0, %v536
    %538 = vmatmul.f32.gmra.mxu0 %v475
    %v539 = vpop.f32.mrf.mxu0
    %v540 = vadd.f32 0.0, %v539
    %541 = vmatmul.f32.gmra.mxu0 %v478
    %v542 = vpop.f32.mrf.mxu0
    %v543 = vadd.f32 0.0, %v542
    %544 = vmatmul.f32.gmra.mxu0 %v481
    %v545 = vpop.f32.mrf.mxu0
    %v546 = vadd.f32 0.0, %v545
    %547 = vmatmul.f32.gmra.mxu0 %v484
    %v548 = vpop.f32.mrf.mxu0
    %v549 = vadd.f32 0.0, %v548
    %550 = vmatmul.f32.gmra.mxu0 %v487
    %v551 = vpop.f32.mrf.mxu0
    %v552 = vadd.f32 0.0, %v551
    %553 = vdwg.mxu0
    %vm554 = vcmask 523264
    %v556 = vsel %vm554, %v409, 0
    %v559 = vsel %vm554, %v410, 0
    %v562 = vsel %vm554, %v411, 0
    %v565 = vsel %vm554, %v412, 0
    %v568 = vsel %vm554, %v413, 0
    %v571 = vsel %vm554, %v414, 0
    %v574 = vsel %vm554, %v415, 0
    %v577 = vsel %vm554, %v416, 0
    %v580 = vsel %vm554, %v417, 0
    %v583 = vsel %vm554, %v418, 0
    %v586 = vsel %vm554, %v419, 0
    %v589 = vsel %vm554, %v420, 0
    %v592 = vsel %vm554, %v421, 0
    %v595 = vsel %vm554, %v422, 0
    %v598 = vsel %vm554, %v423, 0
    %v601 = vsel %vm554, %v424, 0
    %603 = vmatpush.msra.mxu0 0.0
    %604 = vmatpush.msra.mxu0 0.0
    %605 = vmatpush.msra.mxu0 0.0
    %606 = vmatpush.msra.mxu0 0.0
    %607 = vmatpush.msra.mxu0 0.0
    %608 = vmatpush.msra.mxu0 0.0
    %609 = vmatpush.msra.mxu0 0.0
    %610 = vmatpush.msra.mxu0 0.0
    %611 = vmatpush.msra.mxu0 %v408
    %612 = vmatpush.msra.mxu0 %v407
    %613 = vmatpush.msra.mxu0 %v406
    %614 = vmatpush.msra.mxu0 %v405
    %615 = vmatpush.msra.mxu0 %v404
    %616 = vmatpush.msra.mxu0 %v403
    %617 = vmatpush.msra.mxu0 %v402
    %618 = vmatpush.msra.mxu0 %v401
    %619 = vmatmul.f32.gmra.mxu0 %v556
    %v620 = vpop.f32.mrf.mxu0
    %v621 = vadd.f32 %v507, %v620
    %622 = vmatmul.f32.gmra.mxu0 %v559
    %v623 = vpop.f32.mrf.mxu0
    %v624 = vadd.f32 %v510, %v623
    %625 = vmatmul.f32.gmra.mxu0 %v562
    %v626 = vpop.f32.mrf.mxu0
    %v627 = vadd.f32 %v513, %v626
    %628 = vmatmul.f32.gmra.mxu0 %v565
    %v629 = vpop.f32.mrf.mxu0
    %v630 = vadd.f32 %v516, %v629
    %631 = vmatmul.f32.gmra.mxu0 %v568
    %v632 = vpop.f32.mrf.mxu0
    %v633 = vadd.f32 %v519, %v632
    %634 = vmatmul.f32.gmra.mxu0 %v571
    %v635 = vpop.f32.mrf.mxu0
    %v636 = vadd.f32 %v522, %v635
    %637 = vmatmul.f32.gmra.mxu0 %v574
    %v638 = vpop.f32.mrf.mxu0
    %v639 = vadd.f32 %v525, %v638
    %640 = vmatmul.f32.gmra.mxu0 %v577
    %v641 = vpop.f32.mrf.mxu0
    %v642 = vadd.f32 %v528, %v641
    %643 = vmatmul.f32.gmra.mxu0 %v580
    %v644 = vpop.f32.mrf.mxu0
    %v645 = vadd.f32 %v531, %v644
    %646 = vmatmul.f32.gmra.mxu0 %v583
    %v647 = vpop.f32.mrf.mxu0
    %v648 = vadd.f32 %v534, %v647
    %649 = vmatmul.f32.gmra.mxu0 %v586
    %v650 = vpop.f32.mrf.mxu0
    %v651 = vadd.f32 %v537, %v650
    %652 = vmatmul.f32.gmra.mxu0 %v589
    %v653 = vpop.f32.mrf.mxu0
    %v654 = vadd.f32 %v540, %v653
    %655 = vmatmul.f32.gmra.mxu0 %v592
    %v656 = vpop.f32.mrf.mxu0
    %v657 = vadd.f32 %v543, %v656
    %658 = vmatmul.f32.gmra.mxu0 %v595
    %v659 = vpop.f32.mrf.mxu0
    %v660 = vadd.f32 %v546, %v659
    %661 = vmatmul.f32.gmra.mxu0 %v598
    %v662 = vpop.f32.mrf.mxu0
    %v663 = vadd.f32 %v549, %v662
    %664 = vmatmul.f32.gmra.mxu0 %v601
    %v665 = vpop.f32.mrf.mxu0
    %v666 = vadd.f32 %v552, %v665
    %667 = vdwg.mxu0
    %v668 = vld [vmem:[%s10] sm:$0xff]
    %v669 = vld [vmem:[%s10 + $0x8] sm:$0xff]
    %v670 = vld [vmem:[%s10 + $0x10] sm:$0xff]
    %v671 = vld [vmem:[%s10 + $0x18] sm:$0xff]
    %v672 = vld [vmem:[%s10 + $0x20] sm:$0xff]
    %v673 = vld [vmem:[%s10 + $0x28] sm:$0xff]
    %v674 = vld [vmem:[%s10 + $0x30] sm:$0xff]
    %v675 = vld [vmem:[%s10 + $0x38] sm:$0xff]
    %v676 = vld [vmem:[%s10 + $0x40] sm:$0xff]
    %v677 = vld [vmem:[%s10 + $0x48] sm:$0xff]
    %v678 = vld [vmem:[%s10 + $0x50] sm:$0xff]
    %v679 = vld [vmem:[%s10 + $0x58] sm:$0xff]
    %v680 = vld [vmem:[%s10 + $0x60] sm:$0xff]
    %v681 = vld [vmem:[%s10 + $0x68] sm:$0xff]
    %v682 = vld [vmem:[%s10 + $0x70] sm:$0xff]
    %v683 = vld [vmem:[%s10 + $0x78] sm:$0xff]
    %685 = vset.pattern.permute.xlu0 0
    %686 = vperm.xlu0 %685, %v668
    %v687 = vpop.permute.xlu0 %686
    %690 = vset.pattern.permute.xlu0 0
    %691 = vperm.xlu0 %690, %v669
    %v692 = vpop.permute.xlu0 %691
    %695 = vset.pattern.permute.xlu0 0
    %696 = vperm.xlu0 %695, %v670
    %v697 = vpop.permute.xlu0 %696
    %700 = vset.pattern.permute.xlu0 0
    %701 = vperm.xlu0 %700, %v671
    %v702 = vpop.permute.xlu0 %701
    %705 = vset.pattern.permute.xlu0 0
    %706 = vperm.xlu0 %705, %v672
    %v707 = vpop.permute.xlu0 %706
    %710 = vset.pattern.permute.xlu0 0
    %711 = vperm.xlu0 %710, %v673
    %v712 = vpop.permute.xlu0 %711
    %715 = vset.pattern.permute.xlu0 0
    %716 = vperm.xlu0 %715, %v674
    %v717 = vpop.permute.xlu0 %716
    %720 = vset.pattern.permute.xlu0 0
    %721 = vperm.xlu0 %720, %v675
    %v722 = vpop.permute.xlu0 %721
    %725 = vset.pattern.permute.xlu0 0
    %726 = vperm.xlu0 %725, %v676
    %v727 = vpop.permute.xlu0 %726
    %730 = vset.pattern.permute.xlu0 0
    %731 = vperm.xlu0 %730, %v677
    %v732 = vpop.permute.xlu0 %731
    %735 = vset.pattern.permute.xlu0 0
    %736 = vperm.xlu0 %735, %v678
    %v737 = vpop.permute.xlu0 %736
    %740 = vset.pattern.permute.xlu0 0
    %741 = vperm.xlu0 %740, %v679
    %v742 = vpop.permute.xlu0 %741
    %745 = vset.pattern.permute.xlu0 0
    %746 = vperm.xlu0 %745, %v680
    %v747 = vpop.permute.xlu0 %746
    %750 = vset.pattern.permute.xlu0 0
    %751 = vperm.xlu0 %750, %v681
    %v752 = vpop.permute.xlu0 %751
    %755 = vset.pattern.permute.xlu0 0
    %756 = vperm.xlu0 %755, %v682
    %v757 = vpop.permute.xlu0 %756
    %760 = vset.pattern.permute.xlu0 0
    %761 = vperm.xlu0 %760, %v683
    %v762 = vpop.permute.xlu0 %761
    %v764 = vadd.f32 %v621, %v687
    %v765 = vadd.f32 %v624, %v692
    %v766 = vadd.f32 %v627, %v697
    %v767 = vadd.f32 %v630, %v702
    %v768 = vadd.f32 %v633, %v707
    %v769 = vadd.f32 %v636, %v712
    %v770 = vadd.f32 %v639, %v717
    %v771 = vadd.f32 %v642, %v722
    %v772 = vadd.f32 %v645, %v727
    %v773 = vadd.f32 %v648, %v732
    %v774 = vadd.f32 %v651, %v737
    %v775 = vadd.f32 %v654, %v742
    %v776 = vadd.f32 %v657, %v747
    %v777 = vadd.f32 %v660, %v752
    %v778 = vadd.f32 %v663, %v757
    %v779 = vadd.f32 %v666, %v762
    %v780 = vmax.f32 %v764, 0.0
    %v781 = vmax.f32 %v765, 0.0
    %v782 = vmax.f32 %v766, 0.0
    %v783 = vmax.f32 %v767, 0.0
    %v784 = vmax.f32 %v768, 0.0
    %v785 = vmax.f32 %v769, 0.0
    %v786 = vmax.f32 %v770, 0.0
    %v787 = vmax.f32 %v771, 0.0
    %v788 = vmax.f32 %v772, 0.0
    %v789 = vmax.f32 %v773, 0.0
    %v790 = vmax.f32 %v774, 0.0
    %v791 = vmax.f32 %v775, 0.0
    %v792 = vmax.f32 %v776, 0.0
    %v793 = vmax.f32 %v777, 0.0
    %v794 = vmax.f32 %v778, 0.0
    %v795 = vmax.f32 %v779, 0.0
    %v796 = vld [vmem:[%s11] sm:$0xff]
    %v797 = vld [vmem:[%s12] sm:$0xff]
    %799 = vset.pattern.permute.xlu0 0
    %800 = vperm.xlu0 %799, %v797
    %v801 = vpop.permute.xlu0 %800
    %803 = vmatpush.msra.mxu0 %v795
    %804 = vmatpush.msra.mxu0 %v794
    %805 = vmatpush.msra.mxu0 %v793
    %806 = vmatpush.msra.mxu0 %v792
    %807 = vmatpush.msra.mxu0 %v791
    %808 = vmatpush.msra.mxu0 %v790
    %809 = vmatpush.msra.mxu0 %v789
    %810 = vmatpush.msra.mxu0 %v788
    %811 = vmatpush.msra.mxu0 %v787
    %812 = vmatpush.msra.mxu0 %v786
    %813 = vmatpush.msra.mxu0 %v785
    %814 = vmatpush.msra.mxu0 %v784
    %815 = vmatpush.msra.mxu0 %v783
    %816 = vmatpush.msra.mxu0 %v782
    %817 = vmatpush.msra.mxu0 %v781
    %818 = vmatpush.msra.mxu0 %v780
    %819 = vmatmul.f32.gmra.mxu0 %v796
    %v820 = vpop.f32.mrf.mxu0
    %v821 = vadd.f32 %v801, %v820
    %822 = vdwg.mxu0
    %823 = vst.msk [vmem:[#allocation3] sm:$0xff] %vm49, %v821
    // Predicated region
    $region61: #{tpu_custom_call.1} parent=1 // pred_check
      _
    $region62: #{tpu_custom_call.1} parent=1 // pred_check_branch
      %825 = sbr.rel (0) target = $region64
    $region63: #{tpu_custom_call.1} parent=1 // pred_region
      _
    $region64: #{tpu_custom_call.1} parent=1 // pred_fallthru
      _
    // Predicated region
    $region65: #{tpu_custom_call.1} parent=1 // pred_check
      _
    $region66: #{tpu_custom_call.1} parent=1 // pred_check_branch
      %827 = sbr.rel (0) target = $region68
    $region67: #{tpu_custom_call.1} parent=1 // pred_region
      %829 = vsyncadd [#allocation4], 0
      %s831 = sshll.u32 [#allocation3], 4
      %s832 = int_to_ptr.vmem [resolvable:$true] %s831
      %s833 = sshll.u32 %s14, 4
      %s834 = int_to_ptr.hbm [resolvable:$true] %s833
      %836 = dma.vmem_to_hbm [thread:$0]  %s832, 128, %s834, [#allocation4]
    $region68: #{tpu_custom_call.1} parent=1 // pred_fallthru
      _
    // Predicated region
    $region69: #{tpu_custom_call.1} parent=1 // pred_check
      _
    $region70: #{tpu_custom_call.1} parent=1 // pred_check_branch
      %838 = sbr.rel (0) target = $region72
    $region71: #{tpu_custom_call.1} parent=1 // pred_region
      _
    $region72: #{tpu_custom_call.1} parent=1 // pred_fallthru
      _
    // Predicated region
    $region73: #{tpu_custom_call.1} parent=1 // pred_check
      _
    $region74: #{tpu_custom_call.1} parent=1 // pred_check_branch
      %840 = sbr.rel (0) target = $region76
    $region75: #{tpu_custom_call.1} parent=1 // pred_region
      %842 = dma.done [#allocation4], 128
    $region76: #{tpu_custom_call.1} parent=1 // pred_fallthru
      _
    %843 = vsyncpa [#allocation4], 1

</llo_original>
